<compile_context>
chip_gen: v6e
topology: v6e:2x2x1
jax: 0.10.0
libtpu: 0.0.40
codegen_flags: <defaults>
</compile_context>

<pallas_src>
import functools

import jax
import jax.numpy as jnp
from jax import lax
from jax.experimental import pallas as pl
from jax.experimental.pallas import tpu as pltpu


# ----------------------------------------------------------------------------
# Pallas kernel
# ----------------------------------------------------------------------------
def ms_tcn_kernel(x_ref, w1r_ref, wsh_ref, c_ref, o_ref, *, offsets, T, V, cout):
    TV = T * V
    x = x_ref[0].astype(jnp.float32)                          # (Cin, TV)

    # --- one fused MXU call: [stage-1 1x1 ; residual 1x1], BN folded ----------
    hr = jnp.dot(w1r_ref[...], x, preferred_element_type=jnp.float32)  # (2*Cout, TV)
    h_all = hr[0:cout, :] + c_ref[:, 0:1]          # stage-1 conv + folded BN bias
    res = hr[cout:2 * cout, :] + c_ref[:, 1:2]     # residual + all folded epilogue biases
    h_act = jnp.maximum(h_all, 0.0)                # ReLU (dilated / pool branches)

    # Lane index (lanes ordered t*V + v): time-window masks are lane ranges,
    # built once per unique offset and cached.
    l_idx = lax.broadcasted_iota(jnp.int32, (1, TV), 1)
    shift_cache = {}

    def tshift(off):
        # shifted[:, t*V+v] = h_act[:, (t+off)*V+v], zero-filled outside [0, T).
        if off == 0:
            return h_act
        if off not in shift_cache:
            rolled = pltpu.roll(h_act, (-off * V) % TV, axis=1)
            lo = max(0, -off) * V
            hi = min(T, T - off) * V
            shift_cache[off] = jnp.where((l_idx >= lo) & (l_idx < hi), rolled, 0.0)
        return shift_cache[off]

    # --- dilated branches: accumulate one small matmul per unique offset ------
    ydil = None
    for i, off in enumerate(offsets):
        contrib = jnp.dot(wsh_ref[i], tshift(off),
                          preferred_element_type=jnp.float32)           # (Cout, TV)
        ydil = contrib if ydil is None else ydil + contrib

    # --- max-pool branch: zero-fill shift is valid because h_act >= 0 post-ReLU
    # (the +-1 shifts are shared with the dilation-1 branch via the cache).
    m = jnp.maximum(jnp.maximum(tshift(-1), h_act), tshift(1))

    # --- assemble all branches + residual, final ReLU, one full-tile store ----
    #   c[:,2] = pool-BN scale on the pool rows (0 elsewhere)
    #   c[:,3] = 1 on the no-ReLU plain-branch rows (0 elsewhere)
    out = ydil + m * c_ref[:, 2:3] + h_all * c_ref[:, 3:4] + res
    o_ref[0] = jnp.maximum(out, 0.0).astype(o_ref.dtype)


# ----------------------------------------------------------------------------
# Wrapper: fold BNs, build fused weights, call pallas_call
# ----------------------------------------------------------------------------
def ms_tcn_forward(x_nchw, p, *, dilations=(1, 2, 3, 4), kernel_size=3, stride=1):
    # TODO(synk): stride>1 and identity-residual path unimplemented.
    assert stride == 1, "only stride=1 implemented"

    N, cin, T, V = x_nchw.shape
    cout = p['w1'].shape[1]
    nbr = len(dilations) + 2
    assert cout % nbr == 0
    cb = cout // nbr
    nd = len(dilations)
    K = kernel_size
    TV = T * V
    f32 = jnp.float32

    # --- fold BN into stage-1 / residual 1x1 convs; stack into ONE weight ------
    s1, t1 = p['s1'][0], p['t1'][0]
    w1f = (p['w1'] * s1[None, :]).T.astype(f32)              # (Cout, Cin)
    b1f = (p['b1'][0] * s1 + t1).astype(f32)                 # (Cout,)

    sr, tr = p['sr'][0], p['tr'][0]
    wrf = (p['wr'] * sr[None, :]).T.astype(f32)              # (Cout, Cin)
    brf = (p['br'][0] * sr + tr).astype(f32)                 # (Cout,)

    w1r = jnp.concatenate([w1f, wrf], axis=0)                # (2*Cout, Cin)

    # --- per-unique-shift fused weights for the dilated branches ---------------
    offsets = sorted({k * d - ((K - 1) * d) // 2
                      for d in dilations for k in range(K)})
    n_off = len(offsets)
    off_idx = {o: i for i, o in enumerate(offsets)}

    wsh = jnp.zeros((n_off, cout, cout), f32)
    bdil = jnp.zeros((cout,), f32)
    for b, d in enumerate(dilations):
        pad = ((K - 1) * d) // 2                             # == (K+(K-1)(d-1)-1)//2
        s2, t2, b2 = p['s2'][b, 0], p['t2'][b, 0], p['b2'][b, 0]
        r0 = b * cb
        for k in range(K):
            i = off_idx[k * d - pad]
            wf = (p['w2'][b, k].T * s2[:, None]).astype(f32)  # (cb_out, cb_in)
            wsh = wsh.at[i, r0:r0 + cb, r0:r0 + cb].add(wf)
        bdil = bdil.at[r0:r0 + cb].set((b2 * s2 + t2).astype(f32))

    # --- per-channel constants packed into one (Cout, 4) operand ---------------
    #   col 0: stage-1 folded bias
    #   col 1: final additive constant = residual bias + per-branch epilogue bias
    #   col 2: max-pool second-BN scale (0 outside the pool rows)
    #   col 3: plain-branch selector (1 on the no-ReLU branch rows, 0 elsewhere)
    s4, t4 = p['s4'][0].astype(f32), p['t4'][0].astype(f32)
    cadd = brf + bdil
    cadd = cadd.at[nd * cb:(nd + 1) * cb].add(t4)
    poolscale = jnp.zeros((cout,), f32).at[nd * cb:(nd + 1) * cb].set(s4)
    plainsel = jnp.zeros((cout,), f32).at[(nd + 1) * cb:cout].set(1.0)
    consts = jnp.stack([b1f, cadd, poolscale, plainsel], axis=1)   # (Cout, 4)

    # Free reshape: NCHW -> (N, Cin, T*V); output reshaped back at the end.
    x = x_nchw.reshape(N, cin, TV)

    kern = functools.partial(ms_tcn_kernel, offsets=tuple(offsets),
                             T=T, V=V, cout=cout)

    out = pl.pallas_call(
        kern,
        out_shape=jax.ShapeDtypeStruct((N, cout, TV), x_nchw.dtype),
        grid=(N,),
        in_specs=[
            pl.BlockSpec((1, cin, TV), lambda n: (n, 0, 0)),
            pl.BlockSpec((2 * cout, cin), lambda n: (0, 0)),
            pl.BlockSpec((n_off, cout, cout), lambda n: (0, 0, 0)),
            pl.BlockSpec((cout, 4), lambda n: (0, 0)),
        ],
        out_specs=pl.BlockSpec((1, cout, TV), lambda n: (n, 0, 0)),
        compiler_params=pltpu.CompilerParams(dimension_semantics=("parallel",)),
    )(x, w1r, wsh, consts)

    return out.reshape(N, cout, T, V)


# ----------------------------------------------------------------------------
# Pure-JAX reference (NCHW, matches PyTorch eval-mode semantics)
# ----------------------------------------------------------------------------
def ms_tcn_ref(x, p, dilations=(1, 2, 3, 4), K=3):
    cout = p['w1'].shape[1]
    nbr = len(dilations) + 2
    cb = cout // nbr

    def conv1x1(x, w, b):  # w (Cin, Cout), b (1, Cout)
        return jnp.einsum('nctv,co->notv', x, w) + b[0][None, :, None, None]

    def affine(x, s, t):   # s, t (1, C)
        return x * s[0][None, :, None, None] + t[0][None, :, None, None]

    res = affine(conv1x1(x, p['wr'], p['br']), p['sr'], p['tr'])
    h_all = affine(conv1x1(x, p['w1'], p['b1']), p['s1'], p['t1'])
    h_act = jnp.maximum(h_all, 0.0)

    outs = []
    for b, d in enumerate(dilations):
        pad = (K + (K - 1) * (d - 1) - 1) // 2
        h = h_act[:, b * cb:(b + 1) * cb]
        w = jnp.transpose(p['w2'][b], (2, 1, 0))[:, :, :, None]  # (O, I, K, 1)
        y = lax.conv_general_dilated(
            h, w, window_strides=(1, 1), padding=((pad, pad), (0, 0)),
            rhs_dilation=(d, 1), dimension_numbers=('NCHW', 'OIHW', 'NCHW'))
        y = y + p['b2'][b, 0][None, :, None, None]
        y = y * p['s2'][b, 0][None, :, None, None] + p['t2'][b, 0][None, :, None, None]
        outs.append(y)

    h = h_act[:, (nbr - 2) * cb:(nbr - 1) * cb]
    m = lax.reduce_window(h, -jnp.inf, lax.max, (1, 1, 3, 1), (1, 1, 1, 1),
                          ((0, 0), (0, 0), (1, 1), (0, 0)))
    outs.append(affine(m, p['s4'], p['t4']))
    outs.append(h_all[:, (nbr - 1) * cb:])

    out = jnp.concatenate(outs, axis=1) + res
    return jnp.maximum(out, 0.0)


# ----------------------------------------------------------------------------
if __name__ == "__main__":
    N, Cin, T, V = 2, 4, 16, 16
    dilations = (1, 2, 3, 4)
    K = 3
    nbr = len(dilations) + 2          # 6 branches
    Cout = 24                          # multiple of 6
    cb = Cout // nbr

    keys = jax.random.split(jax.random.PRNGKey(0), 16)

    def rn(k, shape, s=0.2):
        return (s * jax.random.normal(k, shape)).astype(jnp.float32)

    params = dict(
        # stage-1 1x1 conv of all 6 branches stacked along out-channels + folded BN
        w1=rn(keys[0], (Cin, Cout)),
        b1=rn(keys[1], (1, Cout), 0.1),
        s1=1.0 + rn(keys[2], (1, Cout), 0.1),
        t1=rn(keys[3], (1, Cout), 0.1),
        # temporal conv weights for the 4 dilation branches: (branch, k, in, out)
        w2=rn(keys[4], (len(dilations), K, cb, cb)),
        b2=rn(keys[5], (len(dilations), 1, cb), 0.1),
        s2=1.0 + rn(keys[6], (len(dilations), 1, cb), 0.1),
        t2=rn(keys[7], (len(dilations), 1, cb), 0.1),
        # second BN of the max-pool branch
        s4=1.0 + rn(keys[8], (1, cb), 0.1),
        t4=rn(keys[9], (1, cb), 0.1),
        # residual TemporalConv (kernel_size=1): 1x1 conv + folded BN
        wr=rn(keys[10], (Cin, Cout)),
        br=rn(keys[11], (1, Cout), 0.1),
        sr=1.0 + rn(keys[12], (1, Cout), 0.1),
        tr=rn(keys[13], (1, Cout), 0.1),
    )

    x = jax.random.normal(keys[14], (N, Cin, T, V), jnp.float32)

    y = jax.block_until_ready(
        ms_tcn_forward(x, params, dilations=dilations, kernel_size=K))
    y_ref = ms_tcn_ref(x, params, dilations=dilations, K=K)

    assert y.shape == (N, Cout, T, V)
    assert jnp.allclose(y, y_ref, atol=1e-4, rtol=1e-4), float(jnp.max(jnp.abs(y - y_ref)))
    print("KERNEL_OK")
</pallas_src>

<mosaic_0001>
module attributes {stable_mosaic.version = 11 : i64} {
  func.func @ms_tcn_kernel(%arg0: i32, %arg1: memref<1x4x256xf32, #tpu.memory_space<vmem>>, %arg2: memref<48x4xf32, #tpu.memory_space<vmem>>, %arg3: memref<9x24x24xf32, #tpu.memory_space<vmem>>, %arg4: memref<24x4xf32, #tpu.memory_space<vmem>>, %arg5: memref<1x24x256xf32, #tpu.memory_space<vmem>>) attributes {dimension_semantics = [#tpu.dimension_semantics<parallel>], iteration_bounds = array<i64: 2>, scalar_prefetch = 0 : i64, scratch_operands = 0 : i64, tpu.core_type = #tpu.core_type<tc>, window_params = [{transform_indices = @transform_0, window_bounds = array<i64: 1, 4, 256>}, {pipeline_mode = #tpu.pipeline_mode<synchronous>, transform_indices = @transform_1, window_bounds = array<i64: 48, 4>}, {pipeline_mode = #tpu.pipeline_mode<synchronous>, transform_indices = @transform_2, window_bounds = array<i64: 9, 24, 24>}, {pipeline_mode = #tpu.pipeline_mode<synchronous>, transform_indices = @transform_3, window_bounds = array<i64: 24, 4>}, {transform_indices = @transform_4, window_bounds = array<i64: 1, 24, 256>}]} {
    %c0 = arith.constant 0 : index
    %c0_0 = arith.constant 0 : index
    %c0_1 = arith.constant 0 : index
    %0 = vector.load %arg1[%c0, %c0_0, %c0_1] : memref<1x4x256xf32, #tpu.memory_space<vmem>>, vector<1x4x256xf32>
    %1 = vector.shape_cast %0 : vector<1x4x256xf32> to vector<4x256xf32>
    %c0_2 = arith.constant 0 : index
    %c0_3 = arith.constant 0 : index
    %2 = vector.load %arg2[%c0_2, %c0_3] : memref<48x4xf32, #tpu.memory_space<vmem>>, vector<48x4xf32>
    %cst = arith.constant dense<0.000000e+00> : vector<48x256xf32>
    %3 = tpu.matmul %2, %1, %cst {dimension_numbers = #tpu.dot_dimension_numbers<[1], [0], [0], [1], [0, 0, 1, 1], [], []>} : vector<48x4xf32>, vector<4x256xf32>, vector<48x256xf32> -> vector<48x256xf32>
    %4 = vector.extract_strided_slice %3 {offsets = [0, 0], sizes = [24, 256], strides = [1, 1]} : vector<48x256xf32> to vector<24x256xf32>
    %c0_4 = arith.constant 0 : index
    %c0_5 = arith.constant 0 : index
    %5 = vector.load %arg4[%c0_4, %c0_5] : memref<24x4xf32, #tpu.memory_space<vmem>>, vector<24x1xf32>
    %6 = vector.broadcast %5 : vector<24x1xf32> to vector<24x256xf32>
    %7 = arith.addf %4, %6 : vector<24x256xf32>
    %8 = vector.extract_strided_slice %3 {offsets = [24, 0], sizes = [24, 256], strides = [1, 1]} : vector<48x256xf32> to vector<24x256xf32>
    %c0_6 = arith.constant 0 : index
    %c1 = arith.constant 1 : index
    %9 = vector.load %arg4[%c0_6, %c1] : memref<24x4xf32, #tpu.memory_space<vmem>>, vector<24x1xf32>
    %10 = vector.broadcast %9 : vector<24x1xf32> to vector<24x256xf32>
    %11 = arith.addf %8, %10 : vector<24x256xf32>
    %cst_7 = arith.constant 0.000000e+00 : f32
    %12 = vector.broadcast %cst_7 : f32 to vector<24x256xf32>
    %13 = arith.maximumf %7, %12 : vector<24x256xf32>
    %14 = tpu.iota {dimensions = array<i32: 1>} : vector<1x256xi32>
    %c0_8 = arith.constant 0 : index
    %c0_9 = arith.constant 0 : index
    %c0_10 = arith.constant 0 : index
    %15 = vector.load %arg3[%c0_8, %c0_9, %c0_10] : memref<9x24x24xf32, #tpu.memory_space<vmem>>, vector<1x24x24xf32>
    %16 = vector.shape_cast %15 : vector<1x24x24xf32> to vector<24x24xf32>
    %c64_i32 = arith.constant 64 : i32
    %17 = tpu.dynamic_rotate %13 by %c64_i32 dim 1 : vector<24x256xf32>, i32 -> vector<24x256xf32>
    %c64_i32_11 = arith.constant 64 : i32
    %18 = vector.broadcast %c64_i32_11 : i32 to vector<1x256xi32>
    %19 = arith.cmpi sge, %14, %18 : vector<1x256xi32>
    %c256_i32 = arith.constant 256 : i32
    %20 = vector.broadcast %c256_i32 : i32 to vector<1x256xi32>
    %21 = arith.cmpi slt, %14, %20 : vector<1x256xi32>
    %22 = arith.andi %19, %21 : vector<1x256xi1>
    %cst_12 = arith.constant 0.000000e+00 : f32
    %23 = vector.shape_cast %22 : vector<1x256xi1> to vector<1x256xi1>
    %24 = vector.broadcast %23 : vector<1x256xi1> to vector<24x256xi1>
    %25 = vector.broadcast %cst_12 : f32 to vector<24x256xf32>
    %26 = arith.select %24, %17, %25 : vector<24x256xi1>, vector<24x256xf32>
    %cst_13 = arith.constant dense<0.000000e+00> : vector<24x256xf32>
    %27 = tpu.matmul %16, %26, %cst_13 {dimension_numbers = #tpu.dot_dimension_numbers<[1], [0], [0], [1], [0, 0, 1, 1], [], []>} : vector<24x24xf32>, vector<24x256xf32>, vector<24x256xf32> -> vector<24x256xf32>
    %c1_14 = arith.constant 1 : index
    %c0_15 = arith.constant 0 : index
    %c0_16 = arith.constant 0 : index
    %28 = vector.load %arg3[%c1_14, %c0_15, %c0_16] : memref<9x24x24xf32, #tpu.memory_space<vmem>>, vector<1x24x24xf32>
    %29 = vector.shape_cast %28 : vector<1x24x24xf32> to vector<24x24xf32>
    %c48_i32 = arith.constant 48 : i32
    %30 = tpu.dynamic_rotate %13 by %c48_i32 dim 1 : vector<24x256xf32>, i32 -> vector<24x256xf32>
    %c48_i32_17 = arith.constant 48 : i32
    %31 = vector.broadcast %c48_i32_17 : i32 to vector<1x256xi32>
    %32 = arith.cmpi sge, %14, %31 : vector<1x256xi32>
    %c256_i32_18 = arith.constant 256 : i32
    %33 = vector.broadcast %c256_i32_18 : i32 to vector<1x256xi32>
    %34 = arith.cmpi slt, %14, %33 : vector<1x256xi32>
    %35 = arith.andi %32, %34 : vector<1x256xi1>
    %cst_19 = arith.constant 0.000000e+00 : f32
    %36 = vector.shape_cast %35 : vector<1x256xi1> to vector<1x256xi1>
    %37 = vector.broadcast %36 : vector<1x256xi1> to vector<24x256xi1>
    %38 = vector.broadcast %cst_19 : f32 to vector<24x256xf32>
    %39 = arith.select %37, %30, %38 : vector<24x256xi1>, vector<24x256xf32>
    %cst_20 = arith.constant dense<0.000000e+00> : vector<24x256xf32>
    %40 = tpu.matmul %29, %39, %cst_20 {dimension_numbers = #tpu.dot_dimension_numbers<[1], [0], [0], [1], [0, 0, 1, 1], [], []>} : vector<24x24xf32>, vector<24x256xf32>, vector<24x256xf32> -> vector<24x256xf32>
    %41 = arith.addf %27, %40 : vector<24x256xf32>
    %c2 = arith.constant 2 : index
    %c0_21 = arith.constant 0 : index
    %c0_22 = arith.constant 0 : index
    %42 = vector.load %arg3[%c2, %c0_21, %c0_22] : memref<9x24x24xf32, #tpu.memory_space<vmem>>, vector<1x24x24xf32>
    %43 = vector.shape_cast %42 : vector<1x24x24xf32> to vector<24x24xf32>
    %c32_i32 = arith.constant 32 : i32
    %44 = tpu.dynamic_rotate %13 by %c32_i32 dim 1 : vector<24x256xf32>, i32 -> vector<24x256xf32>
    %c32_i32_23 = arith.constant 32 : i32
    %45 = vector.broadcast %c32_i32_23 : i32 to vector<1x256xi32>
    %46 = arith.cmpi sge, %14, %45 : vector<1x256xi32>
    %c256_i32_24 = arith.constant 256 : i32
    %47 = vector.broadcast %c256_i32_24 : i32 to vector<1x256xi32>
    %48 = arith.cmpi slt, %14, %47 : vector<1x256xi32>
    %49 = arith.andi %46, %48 : vector<1x256xi1>
    %cst_25 = arith.constant 0.000000e+00 : f32
    %50 = vector.shape_cast %49 : vector<1x256xi1> to vector<1x256xi1>
    %51 = vector.broadcast %50 : vector<1x256xi1> to vector<24x256xi1>
    %52 = vector.broadcast %cst_25 : f32 to vector<24x256xf32>
    %53 = arith.select %51, %44, %52 : vector<24x256xi1>, vector<24x256xf32>
    %cst_26 = arith.constant dense<0.000000e+00> : vector<24x256xf32>
    %54 = tpu.matmul %43, %53, %cst_26 {dimension_numbers = #tpu.dot_dimension_numbers<[1], [0], [0], [1], [0, 0, 1, 1], [], []>} : vector<24x24xf32>, vector<24x256xf32>, vector<24x256xf32> -> vector<24x256xf32>
    %55 = arith.addf %41, %54 : vector<24x256xf32>
    %c3 = arith.constant 3 : index
    %c0_27 = arith.constant 0 : index
    %c0_28 = arith.constant 0 : index
    %56 = vector.load %arg3[%c3, %c0_27, %c0_28] : memref<9x24x24xf32, #tpu.memory_space<vmem>>, vector<1x24x24xf32>
    %57 = vector.shape_cast %56 : vector<1x24x24xf32> to vector<24x24xf32>
    %c16_i32 = arith.constant 16 : i32
    %58 = tpu.dynamic_rotate %13 by %c16_i32 dim 1 : vector<24x256xf32>, i32 -> vector<24x256xf32>
    %c16_i32_29 = arith.constant 16 : i32
    %59 = vector.broadcast %c16_i32_29 : i32 to vector<1x256xi32>
    %60 = arith.cmpi sge, %14, %59 : vector<1x256xi32>
    %c256_i32_30 = arith.constant 256 : i32
    %61 = vector.broadcast %c256_i32_30 : i32 to vector<1x256xi32>
    %62 = arith.cmpi slt, %14, %61 : vector<1x256xi32>
    %63 = arith.andi %60, %62 : vector<1x256xi1>
    %cst_31 = arith.constant 0.000000e+00 : f32
    %64 = vector.shape_cast %63 : vector<1x256xi1> to vector<1x256xi1>
    %65 = vector.broadcast %64 : vector<1x256xi1> to vector<24x256xi1>
    %66 = vector.broadcast %cst_31 : f32 to vector<24x256xf32>
    %67 = arith.select %65, %58, %66 : vector<24x256xi1>, vector<24x256xf32>
    %cst_32 = arith.constant dense<0.000000e+00> : vector<24x256xf32>
    %68 = tpu.matmul %57, %67, %cst_32 {dimension_numbers = #tpu.dot_dimension_numbers<[1], [0], [0], [1], [0, 0, 1, 1], [], []>} : vector<24x24xf32>, vector<24x256xf32>, vector<24x256xf32> -> vector<24x256xf32>
    %69 = arith.addf %55, %68 : vector<24x256xf32>
    %c4 = arith.constant 4 : index
    %c0_33 = arith.constant 0 : index
    %c0_34 = arith.constant 0 : index
    %70 = vector.load %arg3[%c4, %c0_33, %c0_34] : memref<9x24x24xf32, #tpu.memory_space<vmem>>, vector<1x24x24xf32>
    %71 = vector.shape_cast %70 : vector<1x24x24xf32> to vector<24x24xf32>
    %cst_35 = arith.constant dense<0.000000e+00> : vector<24x256xf32>
    %72 = tpu.matmul %71, %13, %cst_35 {dimension_numbers = #tpu.dot_dimension_numbers<[1], [0], [0], [1], [0, 0, 1, 1], [], []>} : vector<24x24xf32>, vector<24x256xf32>, vector<24x256xf32> -> vector<24x256xf32>
    %73 = arith.addf %69, %72 : vector<24x256xf32>
    %c5 = arith.constant 5 : index
    %c0_36 = arith.constant 0 : index
    %c0_37 = arith.constant 0 : index
    %74 = vector.load %arg3[%c5, %c0_36, %c0_37] : memref<9x24x24xf32, #tpu.memory_space<vmem>>, vector<1x24x24xf32>
    %75 = vector.shape_cast %74 : vector<1x24x24xf32> to vector<24x24xf32>
    %c240_i32 = arith.constant 240 : i32
    %76 = tpu.dynamic_rotate %13 by %c240_i32 dim 1 : vector<24x256xf32>, i32 -> vector<24x256xf32>
    %c0_i32 = arith.constant 0 : i32
    %77 = vector.broadcast %c0_i32 : i32 to vector<1x256xi32>
    %78 = arith.cmpi sge, %14, %77 : vector<1x256xi32>
    %c240_i32_38 = arith.constant 240 : i32
    %79 = vector.broadcast %c240_i32_38 : i32 to vector<1x256xi32>
    %80 = arith.cmpi slt, %14, %79 : vector<1x256xi32>
    %81 = arith.andi %78, %80 : vector<1x256xi1>
    %cst_39 = arith.constant 0.000000e+00 : f32
    %82 = vector.shape_cast %81 : vector<1x256xi1> to vector<1x256xi1>
    %83 = vector.broadcast %82 : vector<1x256xi1> to vector<24x256xi1>
    %84 = vector.broadcast %cst_39 : f32 to vector<24x256xf32>
    %85 = arith.select %83, %76, %84 : vector<24x256xi1>, vector<24x256xf32>
    %cst_40 = arith.constant dense<0.000000e+00> : vector<24x256xf32>
    %86 = tpu.matmul %75, %85, %cst_40 {dimension_numbers = #tpu.dot_dimension_numbers<[1], [0], [0], [1], [0, 0, 1, 1], [], []>} : vector<24x24xf32>, vector<24x256xf32>, vector<24x256xf32> -> vector<24x256xf32>
    %87 = arith.addf %73, %86 : vector<24x256xf32>
    %c6 = arith.constant 6 : index
    %c0_41 = arith.constant 0 : index
    %c0_42 = arith.constant 0 : index
    %88 = vector.load %arg3[%c6, %c0_41, %c0_42] : memref<9x24x24xf32, #tpu.memory_space<vmem>>, vector<1x24x24xf32>
    %89 = vector.shape_cast %88 : vector<1x24x24xf32> to vector<24x24xf32>
    %c224_i32 = arith.constant 224 : i32
    %90 = tpu.dynamic_rotate %13 by %c224_i32 dim 1 : vector<24x256xf32>, i32 -> vector<24x256xf32>
    %c0_i32_43 = arith.constant 0 : i32
    %91 = vector.broadcast %c0_i32_43 : i32 to vector<1x256xi32>
    %92 = arith.cmpi sge, %14, %91 : vector<1x256xi32>
    %c224_i32_44 = arith.constant 224 : i32
    %93 = vector.broadcast %c224_i32_44 : i32 to vector<1x256xi32>
    %94 = arith.cmpi slt, %14, %93 : vector<1x256xi32>
    %95 = arith.andi %92, %94 : vector<1x256xi1>
    %cst_45 = arith.constant 0.000000e+00 : f32
    %96 = vector.shape_cast %95 : vector<1x256xi1> to vector<1x256xi1>
    %97 = vector.broadcast %96 : vector<1x256xi1> to vector<24x256xi1>
    %98 = vector.broadcast %cst_45 : f32 to vector<24x256xf32>
    %99 = arith.select %97, %90, %98 : vector<24x256xi1>, vector<24x256xf32>
    %cst_46 = arith.constant dense<0.000000e+00> : vector<24x256xf32>
    %100 = tpu.matmul %89, %99, %cst_46 {dimension_numbers = #tpu.dot_dimension_numbers<[1], [0], [0], [1], [0, 0, 1, 1], [], []>} : vector<24x24xf32>, vector<24x256xf32>, vector<24x256xf32> -> vector<24x256xf32>
    %101 = arith.addf %87, %100 : vector<24x256xf32>
    %c7 = arith.constant 7 : index
    %c0_47 = arith.constant 0 : index
    %c0_48 = arith.constant 0 : index
    %102 = vector.load %arg3[%c7, %c0_47, %c0_48] : memref<9x24x24xf32, #tpu.memory_space<vmem>>, vector<1x24x24xf32>
    %103 = vector.shape_cast %102 : vector<1x24x24xf32> to vector<24x24xf32>
    %c208_i32 = arith.constant 208 : i32
    %104 = tpu.dynamic_rotate %13 by %c208_i32 dim 1 : vector<24x256xf32>, i32 -> vector<24x256xf32>
    %c0_i32_49 = arith.constant 0 : i32
    %105 = vector.broadcast %c0_i32_49 : i32 to vector<1x256xi32>
    %106 = arith.cmpi sge, %14, %105 : vector<1x256xi32>
    %c208_i32_50 = arith.constant 208 : i32
    %107 = vector.broadcast %c208_i32_50 : i32 to vector<1x256xi32>
    %108 = arith.cmpi slt, %14, %107 : vector<1x256xi32>
    %109 = arith.andi %106, %108 : vector<1x256xi1>
    %cst_51 = arith.constant 0.000000e+00 : f32
    %110 = vector.shape_cast %109 : vector<1x256xi1> to vector<1x256xi1>
    %111 = vector.broadcast %110 : vector<1x256xi1> to vector<24x256xi1>
    %112 = vector.broadcast %cst_51 : f32 to vector<24x256xf32>
    %113 = arith.select %111, %104, %112 : vector<24x256xi1>, vector<24x256xf32>
    %cst_52 = arith.constant dense<0.000000e+00> : vector<24x256xf32>
    %114 = tpu.matmul %103, %113, %cst_52 {dimension_numbers = #tpu.dot_dimension_numbers<[1], [0], [0], [1], [0, 0, 1, 1], [], []>} : vector<24x24xf32>, vector<24x256xf32>, vector<24x256xf32> -> vector<24x256xf32>
    %115 = arith.addf %101, %114 : vector<24x256xf32>
    %c8 = arith.constant 8 : index
    %c0_53 = arith.constant 0 : index
    %c0_54 = arith.constant 0 : index
    %116 = vector.load %arg3[%c8, %c0_53, %c0_54] : memref<9x24x24xf32, #tpu.memory_space<vmem>>, vector<1x24x24xf32>
    %117 = vector.shape_cast %116 : vector<1x24x24xf32> to vector<24x24xf32>
    %c192_i32 = arith.constant 192 : i32
    %118 = tpu.dynamic_rotate %13 by %c192_i32 dim 1 : vector<24x256xf32>, i32 -> vector<24x256xf32>
    %c0_i32_55 = arith.constant 0 : i32
    %119 = vector.broadcast %c0_i32_55 : i32 to vector<1x256xi32>
    %120 = arith.cmpi sge, %14, %119 : vector<1x256xi32>
    %c192_i32_56 = arith.constant 192 : i32
    %121 = vector.broadcast %c192_i32_56 : i32 to vector<1x256xi32>
    %122 = arith.cmpi slt, %14, %121 : vector<1x256xi32>
    %123 = arith.andi %120, %122 : vector<1x256xi1>
    %cst_57 = arith.constant 0.000000e+00 : f32
    %124 = vector.shape_cast %123 : vector<1x256xi1> to vector<1x256xi1>
    %125 = vector.broadcast %124 : vector<1x256xi1> to vector<24x256xi1>
    %126 = vector.broadcast %cst_57 : f32 to vector<24x256xf32>
    %127 = arith.select %125, %118, %126 : vector<24x256xi1>, vector<24x256xf32>
    %cst_58 = arith.constant dense<0.000000e+00> : vector<24x256xf32>
    %128 = tpu.matmul %117, %127, %cst_58 {dimension_numbers = #tpu.dot_dimension_numbers<[1], [0], [0], [1], [0, 0, 1, 1], [], []>} : vector<24x24xf32>, vector<24x256xf32>, vector<24x256xf32> -> vector<24x256xf32>
    %129 = arith.addf %115, %128 : vector<24x256xf32>
    %130 = arith.maximumf %67, %13 : vector<24x256xf32>
    %131 = arith.maximumf %130, %85 : vector<24x256xf32>
    %c0_59 = arith.constant 0 : index
    %c2_60 = arith.constant 2 : index
    %132 = vector.load %arg4[%c0_59, %c2_60] : memref<24x4xf32, #tpu.memory_space<vmem>>, vector<24x1xf32>
    %133 = vector.broadcast %132 : vector<24x1xf32> to vector<24x256xf32>
    %134 = arith.mulf %131, %133 : vector<24x256xf32>
    %135 = arith.addf %129, %134 : vector<24x256xf32>
    %c0_61 = arith.constant 0 : index
    %c3_62 = arith.constant 3 : index
    %136 = vector.load %arg4[%c0_61, %c3_62] : memref<24x4xf32, #tpu.memory_space<vmem>>, vector<24x1xf32>
    %137 = vector.broadcast %136 : vector<24x1xf32> to vector<24x256xf32>
    %138 = arith.mulf %7, %137 : vector<24x256xf32>
    %139 = arith.addf %135, %138 : vector<24x256xf32>
    %140 = arith.addf %139, %11 : vector<24x256xf32>
    %cst_63 = arith.constant 0.000000e+00 : f32
    %141 = vector.broadcast %cst_63 : f32 to vector<24x256xf32>
    %142 = arith.maximumf %140, %141 : vector<24x256xf32>
    %c0_64 = arith.constant 0 : index
    %c0_65 = arith.constant 0 : index
    %c0_66 = arith.constant 0 : index
    %143 = vector.load %arg5[%c0_64, %c0_65, %c0_66] : memref<1x24x256xf32, #tpu.memory_space<vmem>>, vector<1x24x256xf32>
    %144 = vector.shape_cast %143 : vector<1x24x256xf32> to vector<24x256xf32>
    %145 = vector.shape_cast %142 : vector<24x256xf32> to vector<1x24x256xf32>
    tpu.vector_store %arg5[%c0_64, %c0_65, %c0_66], %145 {strides = array<i32>} : memref<1x24x256xf32, #tpu.memory_space<vmem>>, vector<1x24x256xf32>,
    return
  }
  func.func @transform_0(%arg0: i32) -> (i32, i32, i32) {
    %c0_i32 = arith.constant 0 : i32
    %c0_i32_0 = arith.constant 0 : i32
    %c0_i32_1 = arith.constant 0 : i32
    return %arg0, %c0_i32, %c0_i32_0 : i32, i32, i32
  }
  func.func @transform_1(%arg0: i32) -> (i32, i32) {
    %c0_i32 = arith.constant 0 : i32
    %c0_i32_0 = arith.constant 0 : i32
    %c0_i32_1 = arith.constant 0 : i32
    return %c0_i32, %c0_i32_0 : i32, i32
  }
  func.func @transform_2(%arg0: i32) -> (i32, i32, i32) {
    %c0_i32 = arith.constant 0 : i32
    %c0_i32_0 = arith.constant 0 : i32
    %c0_i32_1 = arith.constant 0 : i32
    %c0_i32_2 = arith.constant 0 : i32
    return %c0_i32, %c0_i32_0, %c0_i32_1 : i32, i32, i32
  }
  func.func @transform_3(%arg0: i32) -> (i32, i32) {
    %c0_i32 = arith.constant 0 : i32
    %c0_i32_0 = arith.constant 0 : i32
    %c0_i32_1 = arith.constant 0 : i32
    return %c0_i32, %c0_i32_0 : i32, i32
  }
  func.func @transform_4(%arg0: i32) -> (i32, i32, i32) {
    %c0_i32 = arith.constant 0 : i32
    %c0_i32_0 = arith.constant 0 : i32
    %c0_i32_1 = arith.constant 0 : i32
    return %arg0, %c0_i32, %c0_i32_0 : i32, i32, i32
  }
}

</mosaic_0001>

<llo_original>
// kernel: tpu_custom_call.1
$region0: #{tpu_custom_call.1}
  #allocation0 [shape = 'u32[]', space=smem, size = 0x4, offset = 0x4, fixed_abs, tag = 'smem constant byte address 0x4 - core index']
  #allocation1 [shape = 'u32[144,128]{1,0:T(1,128)}', space=vmem, size = 0x12000, scoped, tag = 'internal scratch']
  %s0 = inlined_call_operand.vmem [shape: f32[2,4,256], index: 0, kind: input, shape index: {}]
  %s1 = inlined_call_operand.vmem [shape: f32[48,4], index: 1, kind: input, shape index: {}]
  %s2 = inlined_call_operand.hbm [shape: f32[9,24,24], index: 2, kind: input, shape index: {}]
  %s3 = inlined_call_operand.vmem [shape: f32[24,4], index: 3, kind: input, shape index: {}]
  %s4 = inlined_call_operand.hbm [shape: f32[2,24,256], index: 4, kind: output, shape index: {}]
  %s5 = sld [smem:[#allocation0]]
  $region53: #{tpu_custom_call.1} parent=0
    _
  %s7 = ssub.s32 1, %s5
  %s8 = scalar_select 0, %s7, %s5
  $region1: #{tpu_custom_call.1} parent=0
    #allocation2 [shape = 'u8[110592]{0}', space=vmem, size = 0x1b000, scoped, tag = 'input window, operand 2, single buffered']
    #allocation3 [shape = 's32[2]{0}', space=sflag, size = 0x8, scoped, tag = 'scoped memory for tpu_custom_call.1']
    #allocation4 [shape = 's32[2]{0}', space=sflag, size = 0x8, scoped, tag = 'scoped memory for tpu_custom_call.1']
    #allocation5 [shape = 'u8[49152]{0}', space=vmem, size = 0xc000, scoped, tag = 'output window, operand 0']
    %9 = vsyncpa [#allocation3], 0
    %10 = vsyncpa [#allocation4], 0
    %s11 = scalar_lea.sflag [#allocation4], 1
    %12 = vsyncpa %s11, 0
    loop: start=0, step=1, limit=4
    $region2: #{tpu_custom_call.1} parent=1 // loop_pre_header
      _
    $region3: #{tpu_custom_call.1} parent=1 // loop_header
      %s14 = sphi 0, %s18
      %p15 = scmp.ge.s32.totalorder %s14, 4
      %s24 = sphi 0, %s26
      %s27 = sphi 0, %s24
      %s28 = sphi 0, %s27
      %s44 = sphi 0, %s28
      %s48 = sphi 0, %s48
      %s50 = sphi 0, %s48
      %s51 = sphi 0, %s50
      %s65 = sphi 0, %s51
      %s69 = sphi 0, %s69
      %s71 = sphi 0, %s69
      %s72 = sphi 0, %s71
      %s86 = sphi 0, %s72
      %s90 = sphi 0, %s90
      %s92 = sphi 0, %s90
      %s93 = sphi 0, %s92
      %s107 = sphi 0, %s93
      %s113 = sphi 0, %s115
      %s116 = sphi 0, %s113
      %s117 = sphi 0, %s116
      %s133 = sphi 0, %s117
    $region4: #{tpu_custom_call.1} parent=1 // loop_header_branch
      %17 = sbr.rel (%p15) target = $region8
    $region5: #{tpu_custom_call.1} parent=1 // loop_body
      %s19 = ssub.s32 %s14, 1
      %s20 = ssub.s32 %s14, 2
      %s21 = sadd.s32 %s14, 1
      %s22 = ssub.s32 %s14, %s21
      %p23 = scmp.eq.s32.totalorder %s22, 0
      %s25 = sadd.s32 %s24, 1
      %s26 = scalar_select %p23, %s24, %s25
      %p29 = pneg %p23
      %p30 = scmp.eq.s32.totalorder %s14, 1
      %p31 = por %p29, %p30
      %p32 = scmp.ne.s32.totalorder %s24, %s27
      %p33 = scmp.eq.s32.totalorder %s14, 0
      %p34 = por %p32, %p33
      %p35 = scmp.ne.s32.totalorder %s24, %s27
      %p36 = scmp.eq.s32.totalorder %s19, 1
      %p37 = por %p35, %p36
      %p38 = scmp.ne.s32.totalorder %s27, %s28
      %p39 = scmp.eq.s32.totalorder %s19, 0
      %p40 = por %p38, %p39
      %p41 = scmp.ne.s32.totalorder %s27, %s28
      %p42 = scmp.eq.s32.totalorder %s20, 1
      %p43 = por %p41, %p42
      %p45 = scmp.ne.s32.totalorder %s28, %s44
      %p46 = scmp.eq.s32.totalorder %s20, 0
      %p47 = por %p45, %p46
      %s49 = sadd.s32 %s48, 1
      %p52 = scmp.eq.s32.totalorder %s14, 1
      %p53 = scmp.ne.s32.totalorder %s48, %s50
      %p54 = scmp.eq.s32.totalorder %s14, 0
      %p55 = por %p53, %p54
      %p56 = scmp.ne.s32.totalorder %s48, %s50
      %p57 = scmp.eq.s32.totalorder %s19, 1
      %p58 = por %p56, %p57
      %p59 = scmp.ne.s32.totalorder %s50, %s51
      %p60 = scmp.eq.s32.totalorder %s19, 0
      %p61 = por %p59, %p60
      %p62 = scmp.ne.s32.totalorder %s50, %s51
      %p63 = scmp.eq.s32.totalorder %s20, 1
      %p64 = por %p62, %p63
      %p66 = scmp.ne.s32.totalorder %s51, %s65
      %p67 = scmp.eq.s32.totalorder %s20, 0
      %p68 = por %p66, %p67
      %s70 = sadd.s32 %s69, 1
      %p73 = scmp.eq.s32.totalorder %s14, 1
      %p74 = scmp.ne.s32.totalorder %s69, %s71
      %p75 = scmp.eq.s32.totalorder %s14, 0
      %p76 = por %p74, %p75
      %p77 = scmp.ne.s32.totalorder %s69, %s71
      %p78 = scmp.eq.s32.totalorder %s19, 1
      %p79 = por %p77, %p78
      %p80 = scmp.ne.s32.totalorder %s71, %s72
      %p81 = scmp.eq.s32.totalorder %s19, 0
      %p82 = por %p80, %p81
      %p83 = scmp.ne.s32.totalorder %s71, %s72
      %p84 = scmp.eq.s32.totalorder %s20, 1
      %p85 = por %p83, %p84
      %p87 = scmp.ne.s32.totalorder %s72, %s86
      %p88 = scmp.eq.s32.totalorder %s20, 0
      %p89 = por %p87, %p88
      %s91 = sadd.s32 %s90, 1
      %p94 = scmp.eq.s32.totalorder %s14, 1
      %p95 = scmp.ne.s32.totalorder %s90, %s92
      %p96 = scmp.eq.s32.totalorder %s14, 0
      %p97 = por %p95, %p96
      %p98 = scmp.ne.s32.totalorder %s90, %s92
      %p99 = scmp.eq.s32.totalorder %s19, 1
      %p100 = por %p98, %p99
      %p101 = scmp.ne.s32.totalorder %s92, %s93
      %p102 = scmp.eq.s32.totalorder %s19, 0
      %p103 = por %p101, %p102
      %p104 = scmp.ne.s32.totalorder %s92, %s93
      %p105 = scmp.eq.s32.totalorder %s20, 1
      %p106 = por %p104, %p105
      %p108 = scmp.ne.s32.totalorder %s93, %s107
      %p109 = scmp.eq.s32.totalorder %s20, 0
      %p110 = por %p108, %p109
      %s111 = ssub.s32 %s14, %s21
      %p112 = scmp.eq.s32.totalorder %s111, 0
      %s114 = sadd.s32 %s113, 1
      %s115 = scalar_select %p112, %s113, %s114
      %p118 = pneg %p112
      %p119 = scmp.eq.s32.totalorder %s14, 1
      %p120 = por %p118, %p119
      %p121 = scmp.ne.s32.totalorder %s113, %s116
      %p122 = scmp.eq.s32.totalorder %s14, 0
      %p123 = por %p121, %p122
      %p124 = scmp.ne.s32.totalorder %s113, %s116
      %p125 = scmp.eq.s32.totalorder %s19, 1
      %p126 = por %p124, %p125
      %p127 = scmp.ne.s32.totalorder %s116, %s117
      %p128 = scmp.eq.s32.totalorder %s19, 0
      %p129 = por %p127, %p128
      %p130 = scmp.ne.s32.totalorder %s116, %s117
      %p131 = scmp.eq.s32.totalorder %s20, 1
      %p132 = por %p130, %p131
      %p134 = scmp.ne.s32.totalorder %s117, %s133
      %p135 = scmp.eq.s32.totalorder %s20, 0
      %p136 = por %p134, %p135
      %p137 = scmp.le.s32.totalorder 1, %s14
      %p138 = scmp.lt.s32.totalorder %s14, 3
      %p139 = pnand %p137, %p138
      %p140 = pneg %p139
      // Predicated region
      $region9: #{tpu_custom_call.1} parent=5 // pred_check
        _
      $region10: #{tpu_custom_call.1} parent=5 // pred_check_branch
        %142 = sbr.rel (%p139) target = $region12
      $region11: #{tpu_custom_call.1} parent=5 // pred_region
        %s143 = ssub.s32 %s14, 1
        // Predicated region
        $region13: #{tpu_custom_call.1} parent=11 // pred_check
          %p144 = pneg %p61
        $region14: #{tpu_custom_call.1} parent=11 // pred_check_branch
          %146 = sbr.rel (%p144) target = $region16
        $region15: #{tpu_custom_call.1} parent=11 // pred_region
          _
        $region16: #{tpu_custom_call.1} parent=11 // pred_fallthru
          _
        // Predicated region
        $region17: #{tpu_custom_call.1} parent=11 // pred_check
          %p147 = pneg %p82
        $region18: #{tpu_custom_call.1} parent=11 // pred_check_branch
          %149 = sbr.rel (%p147) target = $region20
        $region19: #{tpu_custom_call.1} parent=11 // pred_region
          %s151 = ssub.s32 3456, 3456
          %152 = vsyncadd [#allocation3], %s151
          %s153 = sshll.u32 [#allocation2], 4
          %s154 = int_to_ptr.vmem [resolvable:$true] %s153
          %159 = dma.hbm_to_vmem [thread:$0]  %s2, 3456, %s154, [#allocation3], 128, 128, 8
        $region20: #{tpu_custom_call.1} parent=11 // pred_fallthru
          _
        // Predicated region
        $region21: #{tpu_custom_call.1} parent=11 // pred_check
          %p160 = pneg %p103
        $region22: #{tpu_custom_call.1} parent=11 // pred_check_branch
          %162 = sbr.rel (%p160) target = $region24
        $region23: #{tpu_custom_call.1} parent=11 // pred_region
          _
        $region24: #{tpu_custom_call.1} parent=11 // pred_fallthru
          _
      $region12: #{tpu_custom_call.1} parent=5 // pred_fallthru
        _
      %p163 = scmp.lt.s32.totalorder %s14, 2
      // Predicated region
      $region25: #{tpu_custom_call.1} parent=5 // pred_check
        %p164 = pneg %p163
      $region26: #{tpu_custom_call.1} parent=5 // pred_check_branch
        %166 = sbr.rel (%p164) target = $region28
      $region27: #{tpu_custom_call.1} parent=5 // pred_region
        // Predicated region
        $region29: #{tpu_custom_call.1} parent=27 // pred_check
          %p167 = pneg %p34
        $region30: #{tpu_custom_call.1} parent=27 // pred_check_branch
          %169 = sbr.rel (%p167) target = $region32
        $region31: #{tpu_custom_call.1} parent=27 // pred_region
          %p170 = scmp.lt.s32.totalorder %s14, 1
          %s171 = scalar_select %p170, %s14, 1
          %s172 = smul.addr %s171, 2
          %s173 = smul.addr %s172, 4
          %s174 = scalar_lea.vmem %s0, %s173
        $region32: #{tpu_custom_call.1} parent=27 // pred_fallthru
          _
      $region28: #{tpu_custom_call.1} parent=5 // pred_fallthru
        _
      %p175 = scmp.le.s32.totalorder 1, %s14
      %p176 = scmp.lt.s32.totalorder %s14, 3
      %p177 = pnand %p175, %p176
      %p178 = pneg %p177
      // Predicated region
      $region33: #{tpu_custom_call.1} parent=5 // pred_check
        _
      $region34: #{tpu_custom_call.1} parent=5 // pred_check_branch
        %180 = sbr.rel (%p177) target = $region36
      $region35: #{tpu_custom_call.1} parent=5 // pred_region
        %s181 = ssub.s32 %s14, 1
        // Predicated region
        $region37: #{tpu_custom_call.1} parent=35 // pred_check
          %p182 = pneg %p82
        $region38: #{tpu_custom_call.1} parent=35 // pred_check_branch
          %184 = sbr.rel (%p182) target = $region40
        $region39: #{tpu_custom_call.1} parent=35 // pred_region
          %185 = dma.done [#allocation3], 3456
        $region40: #{tpu_custom_call.1} parent=35 // pred_fallthru
          _
        %p186 = scmp.lt.s32.totalorder %s19, 1
        %s187 = scalar_select %p186, %s19, 1
        %s188 = smul.addr %s187, 2
        %s189 = smul.addr %s188, 4
        %s190 = scalar_lea.vmem %s0, %s189
        %p191 = pneg %p40
        %p192 = pneg %p37
        %p193 = pneg %p61
        %p194 = pneg %p58
        %p195 = pneg %p82
        %p196 = pneg %p79
        %p197 = pneg %p103
        %p198 = pneg %p100
        %p199 = pneg %p129
        %p200 = pneg %p126
        %s201 = sand.u32 %s116, 1
        %s202 = scalar_lea.sflag [#allocation4], %s201
        %s203 = sand.u32 %s116, 1
        %s204 = smul.addr %s203, 48
        %s205 = scalar_lea.vmem [#allocation5], %s204
        %p206 = scmp.lt.s32.totalorder %s19, 1
        %s207 = scalar_select %p206, %s19, 1
        %s208 = smul.addr %s207, 2
        %s209 = smul.addr %s208, 4
        %s210 = scalar_lea.vmem %s0, %s209
        %v211 = vld [vmem:[%s210] sm:$0xff]
        %v212 = vld [vmem:[%s1] sm:$0xff]
        %v213 = vld [vmem:[%s1 + $0x8] sm:$0xff]
        %v214 = vld [vmem:[%s1 + $0x10] sm:$0xff]
        %v215 = vld [vmem:[%s1 + $0x18] sm:$0xff]
        %v216 = vld [vmem:[%s1 + $0x20] sm:$0xff]
        %v217 = vld [vmem:[%s1 + $0x28] sm:$0xff]
        %v219 = vcombine.high %v211, %v211
        %vm220 = vcmask 31744
        %v222 = vsel %vm220, %v212, 0
        %v225 = vsel %vm220, %v213, 0
        %v228 = vsel %vm220, %v214, 0
        %v231 = vsel %vm220, %v215, 0
        %v234 = vsel %vm220, %v216, 0
        %v237 = vsel %vm220, %v217, 0
        %vm239 = vcmask 1043456
        %v240 = vsel %vm239, %v211, 0
        %v242 = vsel %vm239, %v219, 0
        %244 = vmatprep.subr.mxu0 0.0
        %245 = vmatpush1.msra.mxu0 0.0
        %246 = vmatprep.subr.mxu0 0.0
        %247 = vmatpush1.msra.mxu0 0.0
        %248 = vmatprep.subr.mxu0 0.0
        %249 = vmatpush1.msra.mxu0 0.0
        %250 = vmatprep.subr.mxu0 0.0
        %251 = vmatpush1.msra.mxu0 0.0
        %252 = vmatprep.subr.mxu0 0.0
        %253 = vmatpush1.msra.mxu0 0.0
        %254 = vmatprep.subr.mxu0 0.0
        %255 = vmatpush1.msra.mxu0 0.0
        %256 = vmatprep.subr.mxu0 0.0
        %257 = vmatpush1.msra.mxu0 0.0
        %258 = vmatprep.subr.mxu0 0.0
        %259 = vmatpush1.msra.mxu0 0.0
        %260 = vmatprep.subr.mxu0 0.0
        %261 = vmatpush1.msra.mxu0 0.0
        %262 = vmatprep.subr.mxu0 0.0
        %263 = vmatpush1.msra.mxu0 0.0
        %264 = vmatprep.subr.mxu0 0.0
        %265 = vmatpush1.msra.mxu0 0.0
        %266 = vmatprep.subr.mxu0 0.0
        %267 = vmatpush1.msra.mxu0 0.0
        %268 = vmatprep.subr.mxu0 0.0
        %269 = vmatpush1.msra.mxu0 0.0
        %270 = vmatprep.subr.mxu0 0.0
        %271 = vmatpush1.msra.mxu0 0.0
        %272 = vmatprep.subr.mxu0 0.0
        %273 = vmatpush1.msra.mxu0 0.0
        %274 = vmatprep.subr.mxu0 %v242
        %275 = vmatpush1.msra.mxu0 %v240
        %276 = vmatprep.subr.mxu0 0.0
        %277 = vmatpush2.msra.mxu0 0.0
        %278 = vmatprep.subr.mxu0 0.0
        %279 = vmatpush2.msra.mxu0 0.0
        %280 = vmatprep.subr.mxu0 0.0
        %281 = vmatpush2.msra.mxu0 0.0
        %282 = vmatprep.subr.mxu0 0.0
        %283 = vmatpush2.msra.mxu0 0.0
        %284 = vmatprep.subr.mxu0 0.0
        %285 = vmatpush2.msra.mxu0 0.0
        %286 = vmatprep.subr.mxu0 0.0
        %287 = vmatpush2.msra.mxu0 0.0
        %288 = vmatprep.subr.mxu0 0.0
        %289 = vmatpush2.msra.mxu0 0.0
        %290 = vmatprep.subr.mxu0 0.0
        %291 = vmatpush2.msra.mxu0 0.0
        %292 = vmatprep.subr.mxu0 0.0
        %293 = vmatpush2.msra.mxu0 0.0
        %294 = vmatprep.subr.mxu0 0.0
        %295 = vmatpush2.msra.mxu0 0.0
        %296 = vmatprep.subr.mxu0 0.0
        %297 = vmatpush2.msra.mxu0 0.0
        %298 = vmatprep.subr.mxu0 0.0
        %299 = vmatpush2.msra.mxu0 0.0
        %300 = vmatprep.subr.mxu0 0.0
        %301 = vmatpush2.msra.mxu0 0.0
        %302 = vmatprep.subr.mxu0 0.0
        %303 = vmatpush2.msra.mxu0 0.0
        %304 = vmatprep.subr.mxu0 0.0
        %305 = vmatpush2.msra.mxu0 0.0
        %306 = vmatprep.subr.mxu0 0.0
        %307 = vmatpush2.msra.mxu0 0.0
        %308 = vmatprep.mubr.f32.mxu0 0.0
        %309 = vmatmul.mubr.f32.gmra.mxu0 %v222
        %v310 = vpop.f32.mrf.mxu0
        %v311 = vadd.f32 0.0, %v310
        %v312 = vpop.f32.mrf.mxu0
        %v313 = vadd.f32 0.0, %v312
        %314 = vmatprep.mubr.f32.mxu0 0.0
        %315 = vmatmul.mubr.f32.gmra.mxu0 %v225
        %v316 = vpop.f32.mrf.mxu0
        %v317 = vadd.f32 0.0, %v316
        %v318 = vpop.f32.mrf.mxu0
        %v319 = vadd.f32 0.0, %v318
        %320 = vmatprep.mubr.f32.mxu0 0.0
        %321 = vmatmul.mubr.f32.gmra.mxu0 %v228
        %v322 = vpop.f32.mrf.mxu0
        %v323 = vadd.f32 0.0, %v322
        %v324 = vpop.f32.mrf.mxu0
        %v325 = vadd.f32 0.0, %v324
        %326 = vmatprep.mubr.f32.mxu0 0.0
        %327 = vmatmul.mubr.f32.gmra.mxu0 %v231
        %v328 = vpop.f32.mrf.mxu0
        %v329 = vadd.f32 0.0, %v328
        %v330 = vpop.f32.mrf.mxu0
        %v331 = vadd.f32 0.0, %v330
        %332 = vmatprep.mubr.f32.mxu0 0.0
        %333 = vmatmul.mubr.f32.gmra.mxu0 %v234
        %v334 = vpop.f32.mrf.mxu0
        %v335 = vadd.f32 0.0, %v334
        %v336 = vpop.f32.mrf.mxu0
        %v337 = vadd.f32 0.0, %v336
        %338 = vmatprep.mubr.f32.mxu0 0.0
        %339 = vmatmul.mubr.f32.gmra.mxu0 %v237
        %v340 = vpop.f32.mrf.mxu0
        %v341 = vadd.f32 0.0, %v340
        %v342 = vpop.f32.mrf.mxu0
        %v343 = vadd.f32 0.0, %v342
        %344 = vdwg.mxu0
        %v345 = vld [vmem:[%s3] sm:$0xff]
        %v346 = vld [vmem:[%s3 + $0x8] sm:$0xff]
        %v347 = vld [vmem:[%s3 + $0x10] sm:$0xff]
        %349 = vset.pattern.permute.xlu0 0
        %350 = vperm.xlu0 %349, %v345
        %v351 = vpop.permute.xlu0 %350
        %354 = vset.pattern.permute.xlu0 0
        %355 = vperm.xlu0 %354, %v346
        %v356 = vpop.permute.xlu0 %355
        %359 = vset.pattern.permute.xlu0 0
        %360 = vperm.xlu0 %359, %v347
        %v361 = vpop.permute.xlu0 %360
        %v363 = vadd.f32 %v311, %v351
        %v364 = vadd.f32 %v313, %v351
        %v365 = vadd.f32 %v317, %v356
        %v366 = vadd.f32 %v319, %v356
        %v367 = vadd.f32 %v323, %v361
        %v368 = vadd.f32 %v325, %v361
        %369 = vset.pattern.permute.xlu0 1
        %370 = vperm.xlu0 %369, %v345
        %v371 = vpop.permute.xlu0 %370
        %373 = vset.pattern.permute.xlu0 1
        %374 = vperm.xlu0 %373, %v346
        %v375 = vpop.permute.xlu0 %374
        %377 = vset.pattern.permute.xlu0 1
        %378 = vperm.xlu0 %377, %v347
        %v379 = vpop.permute.xlu0 %378
        %v381 = vadd.f32 %v329, %v371
        %v382 = vadd.f32 %v331, %v371
        %v383 = vadd.f32 %v335, %v375
        %v384 = vadd.f32 %v337, %v375
        %v385 = vadd.f32 %v341, %v379
        %v386 = vadd.f32 %v343, %v379
        %v387 = vmax.f32 %v363, 0.0
        %v388 = vmax.f32 %v364, 0.0
        %v389 = vmax.f32 %v365, 0.0
        %v390 = vmax.f32 %v366, 0.0
        %v391 = vmax.f32 %v367, 0.0
        %v392 = vmax.f32 %v368, 0.0
        %v393 = vlaneseq
        %v394 = vand.u32 %v393, 127
        %v395 = vadd.s32 %v394, 128
        %v396 = vld [vmem:[#allocation2] sm:$0xff]
        %v397 = vld [vmem:[#allocation2 + $0x8] sm:$0xff]
        %v398 = vld [vmem:[#allocation2 + $0x10] sm:$0xff]
        %399 = vrot.lane.b32.xlu0 %v387, 64
        %v400 = vpop.permute.xlu0 %399
        %401 = vrot.lane.b32.xlu0 %v389, 64
        %v402 = vpop.permute.xlu0 %401
        %403 = vrot.lane.b32.xlu0 %v391, 64
        %v404 = vpop.permute.xlu0 %403
        %405 = vrot.lane.b32.xlu0 %v388, 64
        %v406 = vpop.permute.xlu0 %405
        %407 = vrot.lane.b32.xlu0 %v390, 64
        %v408 = vpop.permute.xlu0 %407
        %409 = vrot.lane.b32.xlu0 %v392, 64
        %v410 = vpop.permute.xlu0 %409
        %vm411 = vcmp.lt.s32.totalorder %v394, 64
        %v412 = vsel %vm411, %v400, %v406
        %v413 = vsel %vm411, %v402, %v408
        %v414 = vsel %vm411, %v404, %v410
        %v415 = vsel %vm411, %v406, %v400
        %v416 = vsel %vm411, %v408, %v402
        %v417 = vsel %vm411, %v410, %v404
        %vm418 = vcmp.ge.s32.totalorder %v394, 64
        %vm419 = vcmp.ge.s32.totalorder %v395, 64
        %vm420 = vcmp.lt.s32.totalorder %v394, 256
        %vm421 = vcmp.lt.s32.totalorder %v395, 256
        %vm422 = vmand %vm418, %vm420
        %vm423 = vmand %vm419, %vm421
        %v424 = vsel %vm422, 1, 0
        %v425 = vsel %vm423, 1, 0
        %vm426 = vcmp.eq.s32.totalorder %v424, 1
        %vm427 = vcmp.eq.s32.totalorder %v425, 1
        %v428 = vsel %vm426, %v415, 0.0
        %v429 = vsel %vm427, %v412, 0.0
        %v430 = vsel %vm426, %v416, 0.0
        %v431 = vsel %vm427, %v413, 0.0
        %v432 = vsel %vm426, %v417, 0.0
        %v433 = vsel %vm427, %v414, 0.0
        %s434 = scalar_lea.vmem [#allocation2], 24
        %v435 = vld [vmem:[%s434] sm:$0xff]
        %v436 = vld [vmem:[%s434 + $0x8] sm:$0xff]
        %v437 = vld [vmem:[%s434 + $0x10] sm:$0xff]
        %438 = vrot.lane.b32.xlu0 %v387, 48
        %v439 = vpop.permute.xlu0 %438
        %440 = vrot.lane.b32.xlu0 %v389, 48
        %v441 = vpop.permute.xlu0 %440
        %442 = vrot.lane.b32.xlu0 %v391, 48
        %v443 = vpop.permute.xlu0 %442
        %444 = vrot.lane.b32.xlu0 %v388, 48
        %v445 = vpop.permute.xlu0 %444
        %446 = vrot.lane.b32.xlu0 %v390, 48
        %v447 = vpop.permute.xlu0 %446
        %448 = vrot.lane.b32.xlu0 %v392, 48
        %v449 = vpop.permute.xlu0 %448
        %vm450 = vcmp.lt.s32.totalorder %v394, 48
        %v451 = vsel %vm450, %v439, %v445
        %v452 = vsel %vm450, %v441, %v447
        %v453 = vsel %vm450, %v443, %v449
        %v454 = vsel %vm450, %v445, %v439
        %v455 = vsel %vm450, %v447, %v441
        %v456 = vsel %vm450, %v449, %v443
        %vm457 = vcmp.ge.s32.totalorder %v394, 48
        %vm458 = vcmp.ge.s32.totalorder %v395, 48
        %vm459 = vmand %vm457, %vm420
        %vm460 = vmand %vm458, %vm421
        %v461 = vsel %vm459, 1, 0
        %v462 = vsel %vm460, 1, 0
        %vm463 = vcmp.eq.s32.totalorder %v461, 1
        %vm464 = vcmp.eq.s32.totalorder %v462, 1
        %v465 = vsel %vm463, %v454, 0.0
        %v466 = vsel %vm464, %v451, 0.0
        %v467 = vsel %vm463, %v455, 0.0
        %v468 = vsel %vm464, %v452, 0.0
        %v469 = vsel %vm463, %v456, 0.0
        %v470 = vsel %vm464, %v453, 0.0
        %vm471 = vcmask 195584
        %v473 = vsel %vm471, %v435, 0
        %v476 = vsel %vm471, %v436, 0
        %v479 = vsel %vm471, %v437, 0
        %481 = vmatprep.subr.mxu0 0.0
        %482 = vmatpush1.msra.mxu0 0.0
        %483 = vmatprep.subr.mxu0 0.0
        %484 = vmatpush1.msra.mxu0 0.0
        %485 = vmatprep.subr.mxu0 0.0
        %486 = vmatpush1.msra.mxu0 0.0
        %487 = vmatprep.subr.mxu0 0.0
        %488 = vmatpush1.msra.mxu0 0.0
        %489 = vmatprep.subr.mxu0 0.0
        %490 = vmatpush1.msra.mxu0 0.0
        %491 = vmatprep.subr.mxu0 0.0
        %492 = vmatpush1.msra.mxu0 0.0
        %493 = vmatprep.subr.mxu0 0.0
        %494 = vmatpush1.msra.mxu0 0.0
        %495 = vmatprep.subr.mxu0 0.0
        %496 = vmatpush1.msra.mxu0 0.0
        %497 = vmatprep.subr.mxu0 0.0
        %498 = vmatpush1.msra.mxu0 0.0
        %499 = vmatprep.subr.mxu0 0.0
        %500 = vmatpush1.msra.mxu0 0.0
        %501 = vmatprep.subr.mxu0 0.0
        %502 = vmatpush1.msra.mxu0 0.0
        %503 = vmatprep.subr.mxu0 0.0
        %504 = vmatpush1.msra.mxu0 0.0
        %505 = vmatprep.subr.mxu0 0.0
        %506 = vmatpush1.msra.mxu0 0.0
        %507 = vmatprep.subr.mxu0 %v470
        %508 = vmatpush1.msra.mxu0 %v469
        %509 = vmatprep.subr.mxu0 %v468
        %510 = vmatpush1.msra.mxu0 %v467
        %511 = vmatprep.subr.mxu0 %v466
        %512 = vmatpush1.msra.mxu0 %v465
        %513 = vmatprep.subr.mxu0 0.0
        %514 = vmatpush2.msra.mxu0 0.0
        %515 = vmatprep.subr.mxu0 0.0
        %516 = vmatpush2.msra.mxu0 0.0
        %517 = vmatprep.subr.mxu0 0.0
        %518 = vmatpush2.msra.mxu0 0.0
        %519 = vmatprep.subr.mxu0 0.0
        %520 = vmatpush2.msra.mxu0 0.0
        %521 = vmatprep.subr.mxu0 0.0
        %522 = vmatpush2.msra.mxu0 0.0
        %523 = vmatprep.subr.mxu0 0.0
        %524 = vmatpush2.msra.mxu0 0.0
        %525 = vmatprep.subr.mxu0 0.0
        %526 = vmatpush2.msra.mxu0 0.0
        %527 = vmatprep.subr.mxu0 0.0
        %528 = vmatpush2.msra.mxu0 0.0
        %529 = vmatprep.subr.mxu0 0.0
        %530 = vmatpush2.msra.mxu0 0.0
        %531 = vmatprep.subr.mxu0 0.0
        %532 = vmatpush2.msra.mxu0 0.0
        %533 = vmatprep.subr.mxu0 0.0
        %534 = vmatpush2.msra.mxu0 0.0
        %535 = vmatprep.subr.mxu0 0.0
        %536 = vmatpush2.msra.mxu0 0.0
        %537 = vmatprep.subr.mxu0 0.0
        %538 = vmatpush2.msra.mxu0 0.0
        %539 = vmatprep.subr.mxu0 0.0
        %540 = vmatpush2.msra.mxu0 0.0
        %541 = vmatprep.subr.mxu0 0.0
        %542 = vmatpush2.msra.mxu0 0.0
        %543 = vmatprep.subr.mxu0 0.0
        %544 = vmatpush2.msra.mxu0 0.0
        %545 = vmatprep.mubr.f32.mxu0 0.0
        %546 = vmatmul.mubr.f32.gmra.mxu0 %v473
        %v547 = vpop.f32.mrf.mxu0
        %v548 = vadd.f32 0.0, %v547
        %v549 = vpop.f32.mrf.mxu0
        %v550 = vadd.f32 0.0, %v549
        %551 = vmatprep.mubr.f32.mxu0 0.0
        %552 = vmatmul.mubr.f32.gmra.mxu0 %v476
        %v553 = vpop.f32.mrf.mxu0
        %v554 = vadd.f32 0.0, %v553
        %v555 = vpop.f32.mrf.mxu0
        %v556 = vadd.f32 0.0, %v555
        %557 = vmatprep.mubr.f32.mxu0 0.0
        %558 = vmatmul.mubr.f32.gmra.mxu0 %v479
        %v559 = vpop.f32.mrf.mxu0
        %v560 = vadd.f32 0.0, %v559
        %v561 = vpop.f32.mrf.mxu0
        %v562 = vadd.f32 0.0, %v561
        %563 = vdwg.mxu0
        %v565 = vsel %vm471, %v396, 0
        %v568 = vsel %vm471, %v397, 0
        %v571 = vsel %vm471, %v398, 0
        %573 = vmatprep.subr.mxu0 0.0
        %574 = vmatpush1.msra.mxu0 0.0
        %575 = vmatprep.subr.mxu0 0.0
        %576 = vmatpush1.msra.mxu0 0.0
        %577 = vmatprep.subr.mxu0 0.0
        %578 = vmatpush1.msra.mxu0 0.0
        %579 = vmatprep.subr.mxu0 0.0
        %580 = vmatpush1.msra.mxu0 0.0
        %581 = vmatprep.subr.mxu0 0.0
        %582 = vmatpush1.msra.mxu0 0.0
        %583 = vmatprep.subr.mxu0 0.0
        %584 = vmatpush1.msra.mxu0 0.0
        %585 = vmatprep.subr.mxu0 0.0
        %586 = vmatpush1.msra.mxu0 0.0
        %587 = vmatprep.subr.mxu0 0.0
        %588 = vmatpush1.msra.mxu0 0.0
        %589 = vmatprep.subr.mxu0 0.0
        %590 = vmatpush1.msra.mxu0 0.0
        %591 = vmatprep.subr.mxu0 0.0
        %592 = vmatpush1.msra.mxu0 0.0
        %593 = vmatprep.subr.mxu0 0.0
        %594 = vmatpush1.msra.mxu0 0.0
        %595 = vmatprep.subr.mxu0 0.0
        %596 = vmatpush1.msra.mxu0 0.0
        %597 = vmatprep.subr.mxu0 0.0
        %598 = vmatpush1.msra.mxu0 0.0
        %599 = vmatprep.subr.mxu0 %v433
        %600 = vmatpush1.msra.mxu0 %v432
        %601 = vmatprep.subr.mxu0 %v431
        %602 = vmatpush1.msra.mxu0 %v430
        %603 = vmatprep.subr.mxu0 %v429
        %604 = vmatpush1.msra.mxu0 %v428
        %605 = vmatprep.subr.mxu0 0.0
        %606 = vmatpush2.msra.mxu0 0.0
        %607 = vmatprep.subr.mxu0 0.0
        %608 = vmatpush2.msra.mxu0 0.0
        %609 = vmatprep.subr.mxu0 0.0
        %610 = vmatpush2.msra.mxu0 0.0
        %611 = vmatprep.subr.mxu0 0.0
        %612 = vmatpush2.msra.mxu0 0.0
        %613 = vmatprep.subr.mxu0 0.0
        %614 = vmatpush2.msra.mxu0 0.0
        %615 = vmatprep.subr.mxu0 0.0
        %616 = vmatpush2.msra.mxu0 0.0
        %617 = vmatprep.subr.mxu0 0.0
        %618 = vmatpush2.msra.mxu0 0.0
        %619 = vmatprep.subr.mxu0 0.0
        %620 = vmatpush2.msra.mxu0 0.0
        %621 = vmatprep.subr.mxu0 0.0
        %622 = vmatpush2.msra.mxu0 0.0
        %623 = vmatprep.subr.mxu0 0.0
        %624 = vmatpush2.msra.mxu0 0.0
        %625 = vmatprep.subr.mxu0 0.0
        %626 = vmatpush2.msra.mxu0 0.0
        %627 = vmatprep.subr.mxu0 0.0
        %628 = vmatpush2.msra.mxu0 0.0
        %629 = vmatprep.subr.mxu0 0.0
        %630 = vmatpush2.msra.mxu0 0.0
        %631 = vmatprep.subr.mxu0 0.0
        %632 = vmatpush2.msra.mxu0 0.0
        %633 = vmatprep.subr.mxu0 0.0
        %634 = vmatpush2.msra.mxu0 0.0
        %635 = vmatprep.subr.mxu0 0.0
        %636 = vmatpush2.msra.mxu0 0.0
        %637 = vmatprep.mubr.f32.mxu0 0.0
        %638 = vmatmul.mubr.f32.gmra.mxu0 %v565
        %v639 = vpop.f32.mrf.mxu0
        %v640 = vadd.f32 %v548, %v639
        %v641 = vpop.f32.mrf.mxu0
        %v642 = vadd.f32 %v550, %v641
        %643 = vmatprep.mubr.f32.mxu0 0.0
        %644 = vmatmul.mubr.f32.gmra.mxu0 %v568
        %v645 = vpop.f32.mrf.mxu0
        %v646 = vadd.f32 %v554, %v645
        %v647 = vpop.f32.mrf.mxu0
        %v648 = vadd.f32 %v556, %v647
        %649 = vmatprep.mubr.f32.mxu0 0.0
        %650 = vmatmul.mubr.f32.gmra.mxu0 %v571
        %v651 = vpop.f32.mrf.mxu0
        %v652 = vadd.f32 %v560, %v651
        %v653 = vpop.f32.mrf.mxu0
        %v654 = vadd.f32 %v562, %v653
        %655 = vdwg.mxu0
        %s656 = scalar_lea.vmem [#allocation2], 48
        %v657 = vld [vmem:[%s656] sm:$0xff]
        %v658 = vld [vmem:[%s656 + $0x8] sm:$0xff]
        %v659 = vld [vmem:[%s656 + $0x10] sm:$0xff]
        %660 = vrot.lane.b32.xlu0 %v387, 32
        %v661 = vpop.permute.xlu0 %660
        %662 = vrot.lane.b32.xlu0 %v389, 32
        %v663 = vpop.permute.xlu0 %662
        %664 = vrot.lane.b32.xlu0 %v391, 32
        %v665 = vpop.permute.xlu0 %664
        %666 = vrot.lane.b32.xlu0 %v388, 32
        %v667 = vpop.permute.xlu0 %666
        %668 = vrot.lane.b32.xlu0 %v390, 32
        %v669 = vpop.permute.xlu0 %668
        %670 = vrot.lane.b32.xlu0 %v392, 32
        %v671 = vpop.permute.xlu0 %670
        %vm672 = vcmp.lt.s32.totalorder %v394, 32
        %v673 = vsel %vm672, %v661, %v667
        %v674 = vsel %vm672, %v663, %v669
        %v675 = vsel %vm672, %v665, %v671
        %v676 = vsel %vm672, %v667, %v661
        %v677 = vsel %vm672, %v669, %v663
        %v678 = vsel %vm672, %v671, %v665
        %vm679 = vcmp.ge.s32.totalorder %v394, 32
        %vm680 = vcmp.ge.s32.totalorder %v395, 32
        %vm681 = vmand %vm679, %vm420
        %vm682 = vmand %vm680, %vm421
        %v683 = vsel %vm681, 1, 0
        %v684 = vsel %vm682, 1, 0
        %vm685 = vcmp.eq.s32.totalorder %v683, 1
        %vm686 = vcmp.eq.s32.totalorder %v684, 1
        %v687 = vsel %vm685, %v676, 0.0
        %v688 = vsel %vm686, %v673, 0.0
        %v689 = vsel %vm685, %v677, 0.0
        %v690 = vsel %vm686, %v674, 0.0
        %v691 = vsel %vm685, %v678, 0.0
        %v692 = vsel %vm686, %v675, 0.0
        %v694 = vsel %vm471, %v657, 0
        %v697 = vsel %vm471, %v658, 0
        %v700 = vsel %vm471, %v659, 0
        %702 = vmatprep.subr.mxu0 0.0
        %703 = vmatpush1.msra.mxu0 0.0
        %704 = vmatprep.subr.mxu0 0.0
        %705 = vmatpush1.msra.mxu0 0.0
        %706 = vmatprep.subr.mxu0 0.0
        %707 = vmatpush1.msra.mxu0 0.0
        %708 = vmatprep.subr.mxu0 0.0
        %709 = vmatpush1.msra.mxu0 0.0
        %710 = vmatprep.subr.mxu0 0.0
        %711 = vmatpush1.msra.mxu0 0.0
        %712 = vmatprep.subr.mxu0 0.0
        %713 = vmatpush1.msra.mxu0 0.0
        %714 = vmatprep.subr.mxu0 0.0
        %715 = vmatpush1.msra.mxu0 0.0
        %716 = vmatprep.subr.mxu0 0.0
        %717 = vmatpush1.msra.mxu0 0.0
        %718 = vmatprep.subr.mxu0 0.0
        %719 = vmatpush1.msra.mxu0 0.0
        %720 = vmatprep.subr.mxu0 0.0
        %721 = vmatpush1.msra.mxu0 0.0
        %722 = vmatprep.subr.mxu0 0.0
        %723 = vmatpush1.msra.mxu0 0.0
        %724 = vmatprep.subr.mxu0 0.0
        %725 = vmatpush1.msra.mxu0 0.0
        %726 = vmatprep.subr.mxu0 0.0
        %727 = vmatpush1.msra.mxu0 0.0
        %728 = vmatprep.subr.mxu0 %v692
        %729 = vmatpush1.msra.mxu0 %v691
        %730 = vmatprep.subr.mxu0 %v690
        %731 = vmatpush1.msra.mxu0 %v689
        %732 = vmatprep.subr.mxu0 %v688
        %733 = vmatpush1.msra.mxu0 %v687
        %734 = vmatprep.subr.mxu0 0.0
        %735 = vmatpush2.msra.mxu0 0.0
        %736 = vmatprep.subr.mxu0 0.0
        %737 = vmatpush2.msra.mxu0 0.0
        %738 = vmatprep.subr.mxu0 0.0
        %739 = vmatpush2.msra.mxu0 0.0
        %740 = vmatprep.subr.mxu0 0.0
        %741 = vmatpush2.msra.mxu0 0.0
        %742 = vmatprep.subr.mxu0 0.0
        %743 = vmatpush2.msra.mxu0 0.0
        %744 = vmatprep.subr.mxu0 0.0
        %745 = vmatpush2.msra.mxu0 0.0
        %746 = vmatprep.subr.mxu0 0.0
        %747 = vmatpush2.msra.mxu0 0.0
        %748 = vmatprep.subr.mxu0 0.0
        %749 = vmatpush2.msra.mxu0 0.0
        %750 = vmatprep.subr.mxu0 0.0
        %751 = vmatpush2.msra.mxu0 0.0
        %752 = vmatprep.subr.mxu0 0.0
        %753 = vmatpush2.msra.mxu0 0.0
        %754 = vmatprep.subr.mxu0 0.0
        %755 = vmatpush2.msra.mxu0 0.0
        %756 = vmatprep.subr.mxu0 0.0
        %757 = vmatpush2.msra.mxu0 0.0
        %758 = vmatprep.subr.mxu0 0.0
        %759 = vmatpush2.msra.mxu0 0.0
        %760 = vmatprep.subr.mxu0 0.0
        %761 = vmatpush2.msra.mxu0 0.0
        %762 = vmatprep.subr.mxu0 0.0
        %763 = vmatpush2.msra.mxu0 0.0
        %764 = vmatprep.subr.mxu0 0.0
        %765 = vmatpush2.msra.mxu0 0.0
        %766 = vmatprep.mubr.f32.mxu0 0.0
        %767 = vmatmul.mubr.f32.gmra.mxu0 %v694
        %v768 = vpop.f32.mrf.mxu0
        %v769 = vadd.f32 0.0, %v768
        %v770 = vpop.f32.mrf.mxu0
        %v771 = vadd.f32 0.0, %v770
        %772 = vmatprep.mubr.f32.mxu0 0.0
        %773 = vmatmul.mubr.f32.gmra.mxu0 %v697
        %v774 = vpop.f32.mrf.mxu0
        %v775 = vadd.f32 0.0, %v774
        %v776 = vpop.f32.mrf.mxu0
        %v777 = vadd.f32 0.0, %v776
        %778 = vmatprep.mubr.f32.mxu0 0.0
        %779 = vmatmul.mubr.f32.gmra.mxu0 %v700
        %v780 = vpop.f32.mrf.mxu0
        %v781 = vadd.f32 0.0, %v780
        %v782 = vpop.f32.mrf.mxu0
        %v783 = vadd.f32 0.0, %v782
        %784 = vdwg.mxu0
        %v785 = vadd.f32 %v640, %v769
        %v786 = vadd.f32 %v642, %v771
        %v787 = vadd.f32 %v646, %v775
        %v788 = vadd.f32 %v648, %v777
        %v789 = vadd.f32 %v652, %v781
        %v790 = vadd.f32 %v654, %v783
        %s791 = scalar_lea.vmem [#allocation2], 72
        %v792 = vld [vmem:[%s791] sm:$0xff]
        %v793 = vld [vmem:[%s791 + $0x8] sm:$0xff]
        %v794 = vld [vmem:[%s791 + $0x10] sm:$0xff]
        %795 = vrot.lane.b32.xlu0 %v387, 16
        %v796 = vpop.permute.xlu0 %795
        %797 = vrot.lane.b32.xlu0 %v389, 16
        %v798 = vpop.permute.xlu0 %797
        %799 = vrot.lane.b32.xlu0 %v391, 16
        %v800 = vpop.permute.xlu0 %799
        %801 = vrot.lane.b32.xlu0 %v388, 16
        %v802 = vpop.permute.xlu0 %801
        %803 = vrot.lane.b32.xlu0 %v390, 16
        %v804 = vpop.permute.xlu0 %803
        %805 = vrot.lane.b32.xlu0 %v392, 16
        %v806 = vpop.permute.xlu0 %805
        %vm807 = vcmp.lt.s32.totalorder %v394, 16
        %v808 = vsel %vm807, %v796, %v802
        %v809 = vsel %vm807, %v798, %v804
        %v810 = vsel %vm807, %v800, %v806
        %v811 = vsel %vm807, %v802, %v796
        %v812 = vsel %vm807, %v804, %v798
        %v813 = vsel %vm807, %v806, %v800
        %vm814 = vcmp.ge.s32.totalorder %v394, 16
        %vm815 = vcmp.ge.s32.totalorder %v395, 16
        %vm816 = vmand %vm814, %vm420
        %vm817 = vmand %vm815, %vm421
        %v818 = vsel %vm816, 1, 0
        %v819 = vsel %vm817, 1, 0
        %vm820 = vcmp.eq.s32.totalorder %v818, 1
        %vm821 = vcmp.eq.s32.totalorder %v819, 1
        %v822 = vsel %vm820, %v811, 0.0
        %v823 = vsel %vm821, %v808, 0.0
        %v824 = vsel %vm820, %v812, 0.0
        %v825 = vsel %vm821, %v809, 0.0
        %v826 = vsel %vm820, %v813, 0.0
        %v827 = vsel %vm821, %v810, 0.0
        %v829 = vsel %vm471, %v792, 0
        %v832 = vsel %vm471, %v793, 0
        %v835 = vsel %vm471, %v794, 0
        %837 = vmatprep.subr.mxu0 0.0
        %838 = vmatpush1.msra.mxu0 0.0
        %839 = vmatprep.subr.mxu0 0.0
        %840 = vmatpush1.msra.mxu0 0.0
        %841 = vmatprep.subr.mxu0 0.0
        %842 = vmatpush1.msra.mxu0 0.0
        %843 = vmatprep.subr.mxu0 0.0
        %844 = vmatpush1.msra.mxu0 0.0
        %845 = vmatprep.subr.mxu0 0.0
        %846 = vmatpush1.msra.mxu0 0.0
        %847 = vmatprep.subr.mxu0 0.0
        %848 = vmatpush1.msra.mxu0 0.0
        %849 = vmatprep.subr.mxu0 0.0
        %850 = vmatpush1.msra.mxu0 0.0
        %851 = vmatprep.subr.mxu0 0.0
        %852 = vmatpush1.msra.mxu0 0.0
        %853 = vmatprep.subr.mxu0 0.0
        %854 = vmatpush1.msra.mxu0 0.0
        %855 = vmatprep.subr.mxu0 0.0
        %856 = vmatpush1.msra.mxu0 0.0
        %857 = vmatprep.subr.mxu0 0.0
        %858 = vmatpush1.msra.mxu0 0.0
        %859 = vmatprep.subr.mxu0 0.0
        %860 = vmatpush1.msra.mxu0 0.0
        %861 = vmatprep.subr.mxu0 0.0
        %862 = vmatpush1.msra.mxu0 0.0
        %863 = vmatprep.subr.mxu0 %v827
        %864 = vmatpush1.msra.mxu0 %v826
        %865 = vmatprep.subr.mxu0 %v825
        %866 = vmatpush1.msra.mxu0 %v824
        %867 = vmatprep.subr.mxu0 %v823
        %868 = vmatpush1.msra.mxu0 %v822
        %869 = vmatprep.subr.mxu0 0.0
        %870 = vmatpush2.msra.mxu0 0.0
        %871 = vmatprep.subr.mxu0 0.0
        %872 = vmatpush2.msra.mxu0 0.0
        %873 = vmatprep.subr.mxu0 0.0
        %874 = vmatpush2.msra.mxu0 0.0
        %875 = vmatprep.subr.mxu0 0.0
        %876 = vmatpush2.msra.mxu0 0.0
        %877 = vmatprep.subr.mxu0 0.0
        %878 = vmatpush2.msra.mxu0 0.0
        %879 = vmatprep.subr.mxu0 0.0
        %880 = vmatpush2.msra.mxu0 0.0
        %881 = vmatprep.subr.mxu0 0.0
        %882 = vmatpush2.msra.mxu0 0.0
        %883 = vmatprep.subr.mxu0 0.0
        %884 = vmatpush2.msra.mxu0 0.0
        %885 = vmatprep.subr.mxu0 0.0
        %886 = vmatpush2.msra.mxu0 0.0
        %887 = vmatprep.subr.mxu0 0.0
        %888 = vmatpush2.msra.mxu0 0.0
        %889 = vmatprep.subr.mxu0 0.0
        %890 = vmatpush2.msra.mxu0 0.0
        %891 = vmatprep.subr.mxu0 0.0
        %892 = vmatpush2.msra.mxu0 0.0
        %893 = vmatprep.subr.mxu0 0.0
        %894 = vmatpush2.msra.mxu0 0.0
        %895 = vmatprep.subr.mxu0 0.0
        %896 = vmatpush2.msra.mxu0 0.0
        %897 = vmatprep.subr.mxu0 0.0
        %898 = vmatpush2.msra.mxu0 0.0
        %899 = vmatprep.subr.mxu0 0.0
        %900 = vmatpush2.msra.mxu0 0.0
        %901 = vmatprep.mubr.f32.mxu0 0.0
        %902 = vmatmul.mubr.f32.gmra.mxu0 %v829
        %v903 = vpop.f32.mrf.mxu0
        %v904 = vadd.f32 0.0, %v903
        %v905 = vpop.f32.mrf.mxu0
        %v906 = vadd.f32 0.0, %v905
        %907 = vmatprep.mubr.f32.mxu0 0.0
        %908 = vmatmul.mubr.f32.gmra.mxu0 %v832
        %v909 = vpop.f32.mrf.mxu0
        %v910 = vadd.f32 0.0, %v909
        %v911 = vpop.f32.mrf.mxu0
        %v912 = vadd.f32 0.0, %v911
        %913 = vmatprep.mubr.f32.mxu0 0.0
        %914 = vmatmul.mubr.f32.gmra.mxu0 %v835
        %v915 = vpop.f32.mrf.mxu0
        %v916 = vadd.f32 0.0, %v915
        %v917 = vpop.f32.mrf.mxu0
        %v918 = vadd.f32 0.0, %v917
        %919 = vdwg.mxu0
        %v920 = vadd.f32 %v785, %v904
        %v921 = vadd.f32 %v786, %v906
        %v922 = vadd.f32 %v787, %v910
        %v923 = vadd.f32 %v788, %v912
        %v924 = vadd.f32 %v789, %v916
        %v925 = vadd.f32 %v790, %v918
        %s926 = scalar_lea.vmem [#allocation2], 96
        %v927 = vld [vmem:[%s926] sm:$0xff]
        %v928 = vld [vmem:[%s926 + $0x8] sm:$0xff]
        %v929 = vld [vmem:[%s926 + $0x10] sm:$0xff]
        %v931 = vsel %vm471, %v927, 0
        %v934 = vsel %vm471, %v928, 0
        %v937 = vsel %vm471, %v929, 0
        %939 = vmatprep.subr.mxu0 0.0
        %940 = vmatpush1.msra.mxu0 0.0
        %941 = vmatprep.subr.mxu0 0.0
        %942 = vmatpush1.msra.mxu0 0.0
        %943 = vmatprep.subr.mxu0 0.0
        %944 = vmatpush1.msra.mxu0 0.0
        %945 = vmatprep.subr.mxu0 0.0
        %946 = vmatpush1.msra.mxu0 0.0
        %947 = vmatprep.subr.mxu0 0.0
        %948 = vmatpush1.msra.mxu0 0.0
        %949 = vmatprep.subr.mxu0 0.0
        %950 = vmatpush1.msra.mxu0 0.0
        %951 = vmatprep.subr.mxu0 0.0
        %952 = vmatpush1.msra.mxu0 0.0
        %953 = vmatprep.subr.mxu0 0.0
        %954 = vmatpush1.msra.mxu0 0.0
        %955 = vmatprep.subr.mxu0 0.0
        %956 = vmatpush1.msra.mxu0 0.0
        %957 = vmatprep.subr.mxu0 0.0
        %958 = vmatpush1.msra.mxu0 0.0
        %959 = vmatprep.subr.mxu0 0.0
        %960 = vmatpush1.msra.mxu0 0.0
        %961 = vmatprep.subr.mxu0 0.0
        %962 = vmatpush1.msra.mxu0 0.0
        %963 = vmatprep.subr.mxu0 0.0
        %964 = vmatpush1.msra.mxu0 0.0
        %965 = vmatprep.subr.mxu0 %v392
        %966 = vmatpush1.msra.mxu0 %v391
        %967 = vmatprep.subr.mxu0 %v390
        %968 = vmatpush1.msra.mxu0 %v389
        %969 = vmatprep.subr.mxu0 %v388
        %970 = vmatpush1.msra.mxu0 %v387
        %971 = vmatprep.subr.mxu0 0.0
        %972 = vmatpush2.msra.mxu0 0.0
        %973 = vmatprep.subr.mxu0 0.0
        %974 = vmatpush2.msra.mxu0 0.0
        %975 = vmatprep.subr.mxu0 0.0
        %976 = vmatpush2.msra.mxu0 0.0
        %977 = vmatprep.subr.mxu0 0.0
        %978 = vmatpush2.msra.mxu0 0.0
        %979 = vmatprep.subr.mxu0 0.0
        %980 = vmatpush2.msra.mxu0 0.0
        %981 = vmatprep.subr.mxu0 0.0
        %982 = vmatpush2.msra.mxu0 0.0
        %983 = vmatprep.subr.mxu0 0.0
        %984 = vmatpush2.msra.mxu0 0.0
        %985 = vmatprep.subr.mxu0 0.0
        %986 = vmatpush2.msra.mxu0 0.0
        %987 = vmatprep.subr.mxu0 0.0
        %988 = vmatpush2.msra.mxu0 0.0
        %989 = vmatprep.subr.mxu0 0.0
        %990 = vmatpush2.msra.mxu0 0.0
        %991 = vmatprep.subr.mxu0 0.0
        %992 = vmatpush2.msra.mxu0 0.0
        %993 = vmatprep.subr.mxu0 0.0
        %994 = vmatpush2.msra.mxu0 0.0
        %995 = vmatprep.subr.mxu0 0.0
        %996 = vmatpush2.msra.mxu0 0.0
        %997 = vmatprep.subr.mxu0 0.0
        %998 = vmatpush2.msra.mxu0 0.0
        %999 = vmatprep.subr.mxu0 0.0
        %1000 = vmatpush2.msra.mxu0 0.0
        %1001 = vmatprep.subr.mxu0 0.0
        %1002 = vmatpush2.msra.mxu0 0.0
        %1003 = vmatprep.mubr.f32.mxu0 0.0
        %1004 = vmatmul.mubr.f32.gmra.mxu0 %v931
        %v1005 = vpop.f32.mrf.mxu0
        %v1006 = vadd.f32 0.0, %v1005
        %v1007 = vpop.f32.mrf.mxu0
        %v1008 = vadd.f32 0.0, %v1007
        %1009 = vmatprep.mubr.f32.mxu0 0.0
        %1010 = vmatmul.mubr.f32.gmra.mxu0 %v934
        %v1011 = vpop.f32.mrf.mxu0
        %v1012 = vadd.f32 0.0, %v1011
        %v1013 = vpop.f32.mrf.mxu0
        %v1014 = vadd.f32 0.0, %v1013
        %1015 = vmatprep.mubr.f32.mxu0 0.0
        %1016 = vmatmul.mubr.f32.gmra.mxu0 %v937
        %v1017 = vpop.f32.mrf.mxu0
        %v1018 = vadd.f32 0.0, %v1017
        %v1019 = vpop.f32.mrf.mxu0
        %v1020 = vadd.f32 0.0, %v1019
        %1021 = vdwg.mxu0
        %v1022 = vadd.f32 %v920, %v1006
        %v1023 = vadd.f32 %v921, %v1008
        %v1024 = vadd.f32 %v922, %v1012
        %v1025 = vadd.f32 %v923, %v1014
        %v1026 = vadd.f32 %v924, %v1018
        %v1027 = vadd.f32 %v925, %v1020
        %s1028 = scalar_lea.vmem [#allocation2], 120
        %v1029 = vld [vmem:[%s1028] sm:$0xff]
        %v1030 = vld [vmem:[%s1028 + $0x8] sm:$0xff]
        %v1031 = vld [vmem:[%s1028 + $0x10] sm:$0xff]
        %1032 = vrot.lane.b32.xlu0 %v387, 112
        %v1033 = vpop.permute.xlu0 %1032
        %1034 = vrot.lane.b32.xlu0 %v389, 112
        %v1035 = vpop.permute.xlu0 %1034
        %1036 = vrot.lane.b32.xlu0 %v391, 112
        %v1037 = vpop.permute.xlu0 %1036
        %1038 = vrot.lane.b32.xlu0 %v388, 112
        %v1039 = vpop.permute.xlu0 %1038
        %1040 = vrot.lane.b32.xlu0 %v390, 112
        %v1041 = vpop.permute.xlu0 %1040
        %1042 = vrot.lane.b32.xlu0 %v392, 112
        %v1043 = vpop.permute.xlu0 %1042
        %vm1044 = vcmp.lt.s32.totalorder %v394, 112
        %v1045 = vsel %vm1044, %v1033, %v1039
        %v1046 = vsel %vm1044, %v1035, %v1041
        %v1047 = vsel %vm1044, %v1037, %v1043
        %v1048 = vsel %vm1044, %v1039, %v1033
        %v1049 = vsel %vm1044, %v1041, %v1035
        %v1050 = vsel %vm1044, %v1043, %v1037
        %vm1051 = vcmp.ge.s32.totalorder %v394, 0
        %vm1052 = vcmp.ge.s32.totalorder %v395, 0
        %vm1053 = vcmp.lt.s32.totalorder %v394, 240
        %vm1054 = vcmp.lt.s32.totalorder %v395, 240
        %vm1055 = vmand %vm1051, %vm1053
        %vm1056 = vmand %vm1052, %vm1054
        %v1057 = vsel %vm1055, 1, 0
        %v1058 = vsel %vm1056, 1, 0
        %vm1059 = vcmp.eq.s32.totalorder %v1057, 1
        %vm1060 = vcmp.eq.s32.totalorder %v1058, 1
        %v1061 = vsel %vm1059, %v1045, 0.0
        %v1062 = vsel %vm1060, %v1048, 0.0
        %v1063 = vsel %vm1059, %v1046, 0.0
        %v1064 = vsel %vm1060, %v1049, 0.0
        %v1065 = vsel %vm1059, %v1047, 0.0
        %v1066 = vsel %vm1060, %v1050, 0.0
        %v1068 = vsel %vm471, %v1029, 0
        %v1071 = vsel %vm471, %v1030, 0
        %v1074 = vsel %vm471, %v1031, 0
        %1076 = vmatprep.subr.mxu0 0.0
        %1077 = vmatpush1.msra.mxu0 0.0
        %1078 = vmatprep.subr.mxu0 0.0
        %1079 = vmatpush1.msra.mxu0 0.0
        %1080 = vmatprep.subr.mxu0 0.0
        %1081 = vmatpush1.msra.mxu0 0.0
        %1082 = vmatprep.subr.mxu0 0.0
        %1083 = vmatpush1.msra.mxu0 0.0
        %1084 = vmatprep.subr.mxu0 0.0
        %1085 = vmatpush1.msra.mxu0 0.0
        %1086 = vmatprep.subr.mxu0 0.0
        %1087 = vmatpush1.msra.mxu0 0.0
        %1088 = vmatprep.subr.mxu0 0.0
        %1089 = vmatpush1.msra.mxu0 0.0
        %1090 = vmatprep.subr.mxu0 0.0
        %1091 = vmatpush1.msra.mxu0 0.0
        %1092 = vmatprep.subr.mxu0 0.0
        %1093 = vmatpush1.msra.mxu0 0.0
        %1094 = vmatprep.subr.mxu0 0.0
        %1095 = vmatpush1.msra.mxu0 0.0
        %1096 = vmatprep.subr.mxu0 0.0
        %1097 = vmatpush1.msra.mxu0 0.0
        %1098 = vmatprep.subr.mxu0 0.0
        %1099 = vmatpush1.msra.mxu0 0.0
        %1100 = vmatprep.subr.mxu0 0.0
        %1101 = vmatpush1.msra.mxu0 0.0
        %1102 = vmatprep.subr.mxu0 %v1066
        %1103 = vmatpush1.msra.mxu0 %v1065
        %1104 = vmatprep.subr.mxu0 %v1064
        %1105 = vmatpush1.msra.mxu0 %v1063
        %1106 = vmatprep.subr.mxu0 %v1062
        %1107 = vmatpush1.msra.mxu0 %v1061
        %1108 = vmatprep.subr.mxu0 0.0
        %1109 = vmatpush2.msra.mxu0 0.0
        %1110 = vmatprep.subr.mxu0 0.0
        %1111 = vmatpush2.msra.mxu0 0.0
        %1112 = vmatprep.subr.mxu0 0.0
        %1113 = vmatpush2.msra.mxu0 0.0
        %1114 = vmatprep.subr.mxu0 0.0
        %1115 = vmatpush2.msra.mxu0 0.0
        %1116 = vmatprep.subr.mxu0 0.0
        %1117 = vmatpush2.msra.mxu0 0.0
        %1118 = vmatprep.subr.mxu0 0.0
        %1119 = vmatpush2.msra.mxu0 0.0
        %1120 = vmatprep.subr.mxu0 0.0
        %1121 = vmatpush2.msra.mxu0 0.0
        %1122 = vmatprep.subr.mxu0 0.0
        %1123 = vmatpush2.msra.mxu0 0.0
        %1124 = vmatprep.subr.mxu0 0.0
        %1125 = vmatpush2.msra.mxu0 0.0
        %1126 = vmatprep.subr.mxu0 0.0
        %1127 = vmatpush2.msra.mxu0 0.0
        %1128 = vmatprep.subr.mxu0 0.0
        %1129 = vmatpush2.msra.mxu0 0.0
        %1130 = vmatprep.subr.mxu0 0.0
        %1131 = vmatpush2.msra.mxu0 0.0
        %1132 = vmatprep.subr.mxu0 0.0
        %1133 = vmatpush2.msra.mxu0 0.0
        %1134 = vmatprep.subr.mxu0 0.0
        %1135 = vmatpush2.msra.mxu0 0.0
        %1136 = vmatprep.subr.mxu0 0.0
        %1137 = vmatpush2.msra.mxu0 0.0
        %1138 = vmatprep.subr.mxu0 0.0
        %1139 = vmatpush2.msra.mxu0 0.0
        %1140 = vmatprep.mubr.f32.mxu0 0.0
        %1141 = vmatmul.mubr.f32.gmra.mxu0 %v1068
        %v1142 = vpop.f32.mrf.mxu0
        %v1143 = vadd.f32 0.0, %v1142
        %v1144 = vpop.f32.mrf.mxu0
        %v1145 = vadd.f32 0.0, %v1144
        %1146 = vmatprep.mubr.f32.mxu0 0.0
        %1147 = vmatmul.mubr.f32.gmra.mxu0 %v1071
        %v1148 = vpop.f32.mrf.mxu0
        %v1149 = vadd.f32 0.0, %v1148
        %v1150 = vpop.f32.mrf.mxu0
        %v1151 = vadd.f32 0.0, %v1150
        %1152 = vmatprep.mubr.f32.mxu0 0.0
        %1153 = vmatmul.mubr.f32.gmra.mxu0 %v1074
        %v1154 = vpop.f32.mrf.mxu0
        %v1155 = vadd.f32 0.0, %v1154
        %v1156 = vpop.f32.mrf.mxu0
        %v1157 = vadd.f32 0.0, %v1156
        %1158 = vdwg.mxu0
        %v1159 = vadd.f32 %v1022, %v1143
        %v1160 = vadd.f32 %v1023, %v1145
        %v1161 = vadd.f32 %v1024, %v1149
        %v1162 = vadd.f32 %v1025, %v1151
        %v1163 = vadd.f32 %v1026, %v1155
        %v1164 = vadd.f32 %v1027, %v1157
        %s1165 = scalar_lea.vmem [#allocation2], 144
        %v1166 = vld [vmem:[%s1165] sm:$0xff]
        %v1167 = vld [vmem:[%s1165 + $0x8] sm:$0xff]
        %v1168 = vld [vmem:[%s1165 + $0x10] sm:$0xff]
        %1169 = vrot.lane.b32.xlu0 %v387, 96
        %v1170 = vpop.permute.xlu0 %1169
        %1171 = vrot.lane.b32.xlu0 %v389, 96
        %v1172 = vpop.permute.xlu0 %1171
        %1173 = vrot.lane.b32.xlu0 %v391, 96
        %v1174 = vpop.permute.xlu0 %1173
        %1175 = vrot.lane.b32.xlu0 %v388, 96
        %v1176 = vpop.permute.xlu0 %1175
        %1177 = vrot.lane.b32.xlu0 %v390, 96
        %v1178 = vpop.permute.xlu0 %1177
        %1179 = vrot.lane.b32.xlu0 %v392, 96
        %v1180 = vpop.permute.xlu0 %1179
        %vm1181 = vcmp.lt.s32.totalorder %v394, 96
        %v1182 = vsel %vm1181, %v1170, %v1176
        %v1183 = vsel %vm1181, %v1172, %v1178
        %v1184 = vsel %vm1181, %v1174, %v1180
        %v1185 = vsel %vm1181, %v1176, %v1170
        %v1186 = vsel %vm1181, %v1178, %v1172
        %v1187 = vsel %vm1181, %v1180, %v1174
        %vm1188 = vcmp.lt.s32.totalorder %v394, 224
        %vm1189 = vcmp.lt.s32.totalorder %v395, 224
        %vm1190 = vmand %vm1051, %vm1188
        %vm1191 = vmand %vm1052, %vm1189
        %v1192 = vsel %vm1190, 1, 0
        %v1193 = vsel %vm1191, 1, 0
        %vm1194 = vcmp.eq.s32.totalorder %v1192, 1
        %vm1195 = vcmp.eq.s32.totalorder %v1193, 1
        %v1196 = vsel %vm1194, %v1182, 0.0
        %v1197 = vsel %vm1195, %v1185, 0.0
        %v1198 = vsel %vm1194, %v1183, 0.0
        %v1199 = vsel %vm1195, %v1186, 0.0
        %v1200 = vsel %vm1194, %v1184, 0.0
        %v1201 = vsel %vm1195, %v1187, 0.0
        %v1203 = vsel %vm471, %v1166, 0
        %v1206 = vsel %vm471, %v1167, 0
        %v1209 = vsel %vm471, %v1168, 0
        %1211 = vmatprep.subr.mxu0 0.0
        %1212 = vmatpush1.msra.mxu0 0.0
        %1213 = vmatprep.subr.mxu0 0.0
        %1214 = vmatpush1.msra.mxu0 0.0
        %1215 = vmatprep.subr.mxu0 0.0
        %1216 = vmatpush1.msra.mxu0 0.0
        %1217 = vmatprep.subr.mxu0 0.0
        %1218 = vmatpush1.msra.mxu0 0.0
        %1219 = vmatprep.subr.mxu0 0.0
        %1220 = vmatpush1.msra.mxu0 0.0
        %1221 = vmatprep.subr.mxu0 0.0
        %1222 = vmatpush1.msra.mxu0 0.0
        %1223 = vmatprep.subr.mxu0 0.0
        %1224 = vmatpush1.msra.mxu0 0.0
        %1225 = vmatprep.subr.mxu0 0.0
        %1226 = vmatpush1.msra.mxu0 0.0
        %1227 = vmatprep.subr.mxu0 0.0
        %1228 = vmatpush1.msra.mxu0 0.0
        %1229 = vmatprep.subr.mxu0 0.0
        %1230 = vmatpush1.msra.mxu0 0.0
        %1231 = vmatprep.subr.mxu0 0.0
        %1232 = vmatpush1.msra.mxu0 0.0
        %1233 = vmatprep.subr.mxu0 0.0
        %1234 = vmatpush1.msra.mxu0 0.0
        %1235 = vmatprep.subr.mxu0 0.0
        %1236 = vmatpush1.msra.mxu0 0.0
        %1237 = vmatprep.subr.mxu0 %v1201
        %1238 = vmatpush1.msra.mxu0 %v1200
        %1239 = vmatprep.subr.mxu0 %v1199
        %1240 = vmatpush1.msra.mxu0 %v1198
        %1241 = vmatprep.subr.mxu0 %v1197
        %1242 = vmatpush1.msra.mxu0 %v1196
        %1243 = vmatprep.subr.mxu0 0.0
        %1244 = vmatpush2.msra.mxu0 0.0
        %1245 = vmatprep.subr.mxu0 0.0
        %1246 = vmatpush2.msra.mxu0 0.0
        %1247 = vmatprep.subr.mxu0 0.0
        %1248 = vmatpush2.msra.mxu0 0.0
        %1249 = vmatprep.subr.mxu0 0.0
        %1250 = vmatpush2.msra.mxu0 0.0
        %1251 = vmatprep.subr.mxu0 0.0
        %1252 = vmatpush2.msra.mxu0 0.0
        %1253 = vmatprep.subr.mxu0 0.0
        %1254 = vmatpush2.msra.mxu0 0.0
        %1255 = vmatprep.subr.mxu0 0.0
        %1256 = vmatpush2.msra.mxu0 0.0
        %1257 = vmatprep.subr.mxu0 0.0
        %1258 = vmatpush2.msra.mxu0 0.0
        %1259 = vmatprep.subr.mxu0 0.0
        %1260 = vmatpush2.msra.mxu0 0.0
        %1261 = vmatprep.subr.mxu0 0.0
        %1262 = vmatpush2.msra.mxu0 0.0
        %1263 = vmatprep.subr.mxu0 0.0
        %1264 = vmatpush2.msra.mxu0 0.0
        %1265 = vmatprep.subr.mxu0 0.0
        %1266 = vmatpush2.msra.mxu0 0.0
        %1267 = vmatprep.subr.mxu0 0.0
        %1268 = vmatpush2.msra.mxu0 0.0
        %1269 = vmatprep.subr.mxu0 0.0
        %1270 = vmatpush2.msra.mxu0 0.0
        %1271 = vmatprep.subr.mxu0 0.0
        %1272 = vmatpush2.msra.mxu0 0.0
        %1273 = vmatprep.subr.mxu0 0.0
        %1274 = vmatpush2.msra.mxu0 0.0
        %1275 = vmatprep.mubr.f32.mxu0 0.0
        %1276 = vmatmul.mubr.f32.gmra.mxu0 %v1203
        %v1277 = vpop.f32.mrf.mxu0
        %v1278 = vadd.f32 0.0, %v1277
        %v1279 = vpop.f32.mrf.mxu0
        %v1280 = vadd.f32 0.0, %v1279
        %1281 = vmatprep.mubr.f32.mxu0 0.0
        %1282 = vmatmul.mubr.f32.gmra.mxu0 %v1206
        %v1283 = vpop.f32.mrf.mxu0
        %v1284 = vadd.f32 0.0, %v1283
        %v1285 = vpop.f32.mrf.mxu0
        %v1286 = vadd.f32 0.0, %v1285
        %1287 = vmatprep.mubr.f32.mxu0 0.0
        %1288 = vmatmul.mubr.f32.gmra.mxu0 %v1209
        %v1289 = vpop.f32.mrf.mxu0
        %v1290 = vadd.f32 0.0, %v1289
        %v1291 = vpop.f32.mrf.mxu0
        %v1292 = vadd.f32 0.0, %v1291
        %1293 = vdwg.mxu0
        %v1294 = vadd.f32 %v1159, %v1278
        %v1295 = vadd.f32 %v1160, %v1280
        %v1296 = vadd.f32 %v1161, %v1284
        %v1297 = vadd.f32 %v1162, %v1286
        %v1298 = vadd.f32 %v1163, %v1290
        %v1299 = vadd.f32 %v1164, %v1292
        %s1300 = scalar_lea.vmem [#allocation2], 168
        %v1301 = vld [vmem:[%s1300] sm:$0xff]
        %v1302 = vld [vmem:[%s1300 + $0x8] sm:$0xff]
        %v1303 = vld [vmem:[%s1300 + $0x10] sm:$0xff]
        %1304 = vrot.lane.b32.xlu0 %v387, 80
        %v1305 = vpop.permute.xlu0 %1304
        %1306 = vrot.lane.b32.xlu0 %v389, 80
        %v1307 = vpop.permute.xlu0 %1306
        %1308 = vrot.lane.b32.xlu0 %v391, 80
        %v1309 = vpop.permute.xlu0 %1308
        %1310 = vrot.lane.b32.xlu0 %v388, 80
        %v1311 = vpop.permute.xlu0 %1310
        %1312 = vrot.lane.b32.xlu0 %v390, 80
        %v1313 = vpop.permute.xlu0 %1312
        %1314 = vrot.lane.b32.xlu0 %v392, 80
        %v1315 = vpop.permute.xlu0 %1314
        %vm1316 = vcmp.lt.s32.totalorder %v394, 80
        %v1317 = vsel %vm1316, %v1305, %v1311
        %v1318 = vsel %vm1316, %v1307, %v1313
        %v1319 = vsel %vm1316, %v1309, %v1315
        %v1320 = vsel %vm1316, %v1311, %v1305
        %v1321 = vsel %vm1316, %v1313, %v1307
        %v1322 = vsel %vm1316, %v1315, %v1309
        %vm1323 = vcmp.lt.s32.totalorder %v394, 208
        %vm1324 = vcmp.lt.s32.totalorder %v395, 208
        %vm1325 = vmand %vm1051, %vm1323
        %vm1326 = vmand %vm1052, %vm1324
        %v1327 = vsel %vm1325, 1, 0
        %v1328 = vsel %vm1326, 1, 0
        %vm1329 = vcmp.eq.s32.totalorder %v1327, 1
        %vm1330 = vcmp.eq.s32.totalorder %v1328, 1
        %v1331 = vsel %vm1329, %v1317, 0.0
        %v1332 = vsel %vm1330, %v1320, 0.0
        %v1333 = vsel %vm1329, %v1318, 0.0
        %v1334 = vsel %vm1330, %v1321, 0.0
        %v1335 = vsel %vm1329, %v1319, 0.0
        %v1336 = vsel %vm1330, %v1322, 0.0
        %v1338 = vsel %vm471, %v1301, 0
        %v1341 = vsel %vm471, %v1302, 0
        %v1344 = vsel %vm471, %v1303, 0
        %1346 = vmatprep.subr.mxu0 0.0
        %1347 = vmatpush1.msra.mxu0 0.0
        %1348 = vmatprep.subr.mxu0 0.0
        %1349 = vmatpush1.msra.mxu0 0.0
        %1350 = vmatprep.subr.mxu0 0.0
        %1351 = vmatpush1.msra.mxu0 0.0
        %1352 = vmatprep.subr.mxu0 0.0
        %1353 = vmatpush1.msra.mxu0 0.0
        %1354 = vmatprep.subr.mxu0 0.0
        %1355 = vmatpush1.msra.mxu0 0.0
        %1356 = vmatprep.subr.mxu0 0.0
        %1357 = vmatpush1.msra.mxu0 0.0
        %1358 = vmatprep.subr.mxu0 0.0
        %1359 = vmatpush1.msra.mxu0 0.0
        %1360 = vmatprep.subr.mxu0 0.0
        %1361 = vmatpush1.msra.mxu0 0.0
        %1362 = vmatprep.subr.mxu0 0.0
        %1363 = vmatpush1.msra.mxu0 0.0
        %1364 = vmatprep.subr.mxu0 0.0
        %1365 = vmatpush1.msra.mxu0 0.0
        %1366 = vmatprep.subr.mxu0 0.0
        %1367 = vmatpush1.msra.mxu0 0.0
        %1368 = vmatprep.subr.mxu0 0.0
        %1369 = vmatpush1.msra.mxu0 0.0
        %1370 = vmatprep.subr.mxu0 0.0
        %1371 = vmatpush1.msra.mxu0 0.0
        %1372 = vmatprep.subr.mxu0 %v1336
        %1373 = vmatpush1.msra.mxu0 %v1335
        %1374 = vmatprep.subr.mxu0 %v1334
        %1375 = vmatpush1.msra.mxu0 %v1333
        %1376 = vmatprep.subr.mxu0 %v1332
        %1377 = vmatpush1.msra.mxu0 %v1331
        %1378 = vmatprep.subr.mxu0 0.0
        %1379 = vmatpush2.msra.mxu0 0.0
        %1380 = vmatprep.subr.mxu0 0.0
        %1381 = vmatpush2.msra.mxu0 0.0
        %1382 = vmatprep.subr.mxu0 0.0
        %1383 = vmatpush2.msra.mxu0 0.0
        %1384 = vmatprep.subr.mxu0 0.0
        %1385 = vmatpush2.msra.mxu0 0.0
        %1386 = vmatprep.subr.mxu0 0.0
        %1387 = vmatpush2.msra.mxu0 0.0
        %1388 = vmatprep.subr.mxu0 0.0
        %1389 = vmatpush2.msra.mxu0 0.0
        %1390 = vmatprep.subr.mxu0 0.0
        %1391 = vmatpush2.msra.mxu0 0.0
        %1392 = vmatprep.subr.mxu0 0.0
        %1393 = vmatpush2.msra.mxu0 0.0
        %1394 = vmatprep.subr.mxu0 0.0
        %1395 = vmatpush2.msra.mxu0 0.0
        %1396 = vmatprep.subr.mxu0 0.0
        %1397 = vmatpush2.msra.mxu0 0.0
        %1398 = vmatprep.subr.mxu0 0.0
        %1399 = vmatpush2.msra.mxu0 0.0
        %1400 = vmatprep.subr.mxu0 0.0
        %1401 = vmatpush2.msra.mxu0 0.0
        %1402 = vmatprep.subr.mxu0 0.0
        %1403 = vmatpush2.msra.mxu0 0.0
        %1404 = vmatprep.subr.mxu0 0.0
        %1405 = vmatpush2.msra.mxu0 0.0
        %1406 = vmatprep.subr.mxu0 0.0
        %1407 = vmatpush2.msra.mxu0 0.0
        %1408 = vmatprep.subr.mxu0 0.0
        %1409 = vmatpush2.msra.mxu0 0.0
        %1410 = vmatprep.mubr.f32.mxu0 0.0
        %1411 = vmatmul.mubr.f32.gmra.mxu0 %v1338
        %v1412 = vpop.f32.mrf.mxu0
        %v1413 = vadd.f32 0.0, %v1412
        %v1414 = vpop.f32.mrf.mxu0
        %v1415 = vadd.f32 0.0, %v1414
        %1416 = vmatprep.mubr.f32.mxu0 0.0
        %1417 = vmatmul.mubr.f32.gmra.mxu0 %v1341
        %v1418 = vpop.f32.mrf.mxu0
        %v1419 = vadd.f32 0.0, %v1418
        %v1420 = vpop.f32.mrf.mxu0
        %v1421 = vadd.f32 0.0, %v1420
        %1422 = vmatprep.mubr.f32.mxu0 0.0
        %1423 = vmatmul.mubr.f32.gmra.mxu0 %v1344
        %v1424 = vpop.f32.mrf.mxu0
        %v1425 = vadd.f32 0.0, %v1424
        %v1426 = vpop.f32.mrf.mxu0
        %v1427 = vadd.f32 0.0, %v1426
        %1428 = vdwg.mxu0
        %v1429 = vadd.f32 %v1294, %v1413
        %v1430 = vadd.f32 %v1295, %v1415
        %v1431 = vadd.f32 %v1296, %v1419
        %v1432 = vadd.f32 %v1297, %v1421
        %v1433 = vadd.f32 %v1298, %v1425
        %v1434 = vadd.f32 %v1299, %v1427
        %s1435 = scalar_lea.vmem [#allocation2], 192
        %v1436 = vld [vmem:[%s1435] sm:$0xff]
        %v1437 = vld [vmem:[%s1435 + $0x8] sm:$0xff]
        %v1438 = vld [vmem:[%s1435 + $0x10] sm:$0xff]
        %vm1439 = vcmp.lt.s32.totalorder %v394, 192
        %vm1440 = vcmp.lt.s32.totalorder %v395, 192
        %vm1441 = vmand %vm1051, %vm1439
        %vm1442 = vmand %vm1052, %vm1440
        %v1443 = vsel %vm1441, 1, 0
        %v1444 = vsel %vm1442, 1, 0
        %vm1445 = vcmp.eq.s32.totalorder %v1443, 1
        %vm1446 = vcmp.eq.s32.totalorder %v1444, 1
        %v1447 = vsel %vm1445, %v412, 0.0
        %v1448 = vsel %vm1446, %v415, 0.0
        %v1449 = vsel %vm1445, %v413, 0.0
        %v1450 = vsel %vm1446, %v416, 0.0
        %v1451 = vsel %vm1445, %v414, 0.0
        %v1452 = vsel %vm1446, %v417, 0.0
        %v1454 = vsel %vm471, %v1436, 0
        %v1457 = vsel %vm471, %v1437, 0
        %v1460 = vsel %vm471, %v1438, 0
        %1462 = vmatprep.subr.mxu0 0.0
        %1463 = vmatpush1.msra.mxu0 0.0
        %1464 = vmatprep.subr.mxu0 0.0
        %1465 = vmatpush1.msra.mxu0 0.0
        %1466 = vmatprep.subr.mxu0 0.0
        %1467 = vmatpush1.msra.mxu0 0.0
        %1468 = vmatprep.subr.mxu0 0.0
        %1469 = vmatpush1.msra.mxu0 0.0
        %1470 = vmatprep.subr.mxu0 0.0
        %1471 = vmatpush1.msra.mxu0 0.0
        %1472 = vmatprep.subr.mxu0 0.0
        %1473 = vmatpush1.msra.mxu0 0.0
        %1474 = vmatprep.subr.mxu0 0.0
        %1475 = vmatpush1.msra.mxu0 0.0
        %1476 = vmatprep.subr.mxu0 0.0
        %1477 = vmatpush1.msra.mxu0 0.0
        %1478 = vmatprep.subr.mxu0 0.0
        %1479 = vmatpush1.msra.mxu0 0.0
        %1480 = vmatprep.subr.mxu0 0.0
        %1481 = vmatpush1.msra.mxu0 0.0
        %1482 = vmatprep.subr.mxu0 0.0
        %1483 = vmatpush1.msra.mxu0 0.0
        %1484 = vmatprep.subr.mxu0 0.0
        %1485 = vmatpush1.msra.mxu0 0.0
        %1486 = vmatprep.subr.mxu0 0.0
        %1487 = vmatpush1.msra.mxu0 0.0
        %1488 = vmatprep.subr.mxu0 %v1452
        %1489 = vmatpush1.msra.mxu0 %v1451
        %1490 = vmatprep.subr.mxu0 %v1450
        %1491 = vmatpush1.msra.mxu0 %v1449
        %1492 = vmatprep.subr.mxu0 %v1448
        %1493 = vmatpush1.msra.mxu0 %v1447
        %1494 = vmatprep.subr.mxu0 0.0
        %1495 = vmatpush2.msra.mxu0 0.0
        %1496 = vmatprep.subr.mxu0 0.0
        %1497 = vmatpush2.msra.mxu0 0.0
        %1498 = vmatprep.subr.mxu0 0.0
        %1499 = vmatpush2.msra.mxu0 0.0
        %1500 = vmatprep.subr.mxu0 0.0
        %1501 = vmatpush2.msra.mxu0 0.0
        %1502 = vmatprep.subr.mxu0 0.0
        %1503 = vmatpush2.msra.mxu0 0.0
        %1504 = vmatprep.subr.mxu0 0.0
        %1505 = vmatpush2.msra.mxu0 0.0
        %1506 = vmatprep.subr.mxu0 0.0
        %1507 = vmatpush2.msra.mxu0 0.0
        %1508 = vmatprep.subr.mxu0 0.0
        %1509 = vmatpush2.msra.mxu0 0.0
        %1510 = vmatprep.subr.mxu0 0.0
        %1511 = vmatpush2.msra.mxu0 0.0
        %1512 = vmatprep.subr.mxu0 0.0
        %1513 = vmatpush2.msra.mxu0 0.0
        %1514 = vmatprep.subr.mxu0 0.0
        %1515 = vmatpush2.msra.mxu0 0.0
        %1516 = vmatprep.subr.mxu0 0.0
        %1517 = vmatpush2.msra.mxu0 0.0
        %1518 = vmatprep.subr.mxu0 0.0
        %1519 = vmatpush2.msra.mxu0 0.0
        %1520 = vmatprep.subr.mxu0 0.0
        %1521 = vmatpush2.msra.mxu0 0.0
        %1522 = vmatprep.subr.mxu0 0.0
        %1523 = vmatpush2.msra.mxu0 0.0
        %1524 = vmatprep.subr.mxu0 0.0
        %1525 = vmatpush2.msra.mxu0 0.0
        %1526 = vmatprep.mubr.f32.mxu0 0.0
        %1527 = vmatmul.mubr.f32.gmra.mxu0 %v1454
        %v1528 = vpop.f32.mrf.mxu0
        %v1529 = vadd.f32 0.0, %v1528
        %v1530 = vpop.f32.mrf.mxu0
        %v1531 = vadd.f32 0.0, %v1530
        %1532 = vmatprep.mubr.f32.mxu0 0.0
        %1533 = vmatmul.mubr.f32.gmra.mxu0 %v1457
        %v1534 = vpop.f32.mrf.mxu0
        %v1535 = vadd.f32 0.0, %v1534
        %v1536 = vpop.f32.mrf.mxu0
        %v1537 = vadd.f32 0.0, %v1536
        %1538 = vmatprep.mubr.f32.mxu0 0.0
        %1539 = vmatmul.mubr.f32.gmra.mxu0 %v1460
        %v1540 = vpop.f32.mrf.mxu0
        %v1541 = vadd.f32 0.0, %v1540
        %v1542 = vpop.f32.mrf.mxu0
        %v1543 = vadd.f32 0.0, %v1542
        %1544 = vdwg.mxu0
        %v1545 = vadd.f32 %v1429, %v1529
        %v1546 = vadd.f32 %v1430, %v1531
        %v1547 = vadd.f32 %v1431, %v1535
        %v1548 = vadd.f32 %v1432, %v1537
        %v1549 = vadd.f32 %v1433, %v1541
        %v1550 = vadd.f32 %v1434, %v1543
        %v1551 = vmax.f32 %v822, %v387
        %v1552 = vmax.f32 %v823, %v388
        %v1553 = vmax.f32 %v824, %v389
        %v1554 = vmax.f32 %v825, %v390
        %v1555 = vmax.f32 %v826, %v391
        %v1556 = vmax.f32 %v827, %v392
        %v1557 = vmax.f32 %v1551, %v1061
        %v1558 = vmax.f32 %v1552, %v1062
        %v1559 = vmax.f32 %v1553, %v1063
        %v1560 = vmax.f32 %v1554, %v1064
        %v1561 = vmax.f32 %v1555, %v1065
        %v1562 = vmax.f32 %v1556, %v1066
        %1563 = vset.pattern.permute.xlu0 2
        %1564 = vperm.xlu0 %1563, %v345
        %v1565 = vpop.permute.xlu0 %1564
        %1567 = vset.pattern.permute.xlu0 2
        %1568 = vperm.xlu0 %1567, %v346
        %v1569 = vpop.permute.xlu0 %1568
        %1571 = vset.pattern.permute.xlu0 2
        %1572 = vperm.xlu0 %1571, %v347
        %v1573 = vpop.permute.xlu0 %1572
        %v1575 = vmul.f32 %v1557, %v1565
        %v1576 = vmul.f32 %v1558, %v1565
        %v1577 = vmul.f32 %v1559, %v1569
        %v1578 = vmul.f32 %v1560, %v1569
        %v1579 = vmul.f32 %v1561, %v1573
        %v1580 = vmul.f32 %v1562, %v1573
        %v1581 = vadd.f32 %v1545, %v1575
        %v1582 = vadd.f32 %v1546, %v1576
        %v1583 = vadd.f32 %v1547, %v1577
        %v1584 = vadd.f32 %v1548, %v1578
        %v1585 = vadd.f32 %v1549, %v1579
        %v1586 = vadd.f32 %v1550, %v1580
        %1587 = vset.pattern.permute.xlu0 3
        %1588 = vperm.xlu0 %1587, %v345
        %v1589 = vpop.permute.xlu0 %1588
        %1591 = vset.pattern.permute.xlu0 3
        %1592 = vperm.xlu0 %1591, %v346
        %v1593 = vpop.permute.xlu0 %1592
        %1595 = vset.pattern.permute.xlu0 3
        %1596 = vperm.xlu0 %1595, %v347
        %v1597 = vpop.permute.xlu0 %1596
        %v1599 = vmul.f32 %v363, %v1589
        %v1600 = vmul.f32 %v364, %v1589
        %v1601 = vmul.f32 %v365, %v1593
        %v1602 = vmul.f32 %v366, %v1593
        %v1603 = vmul.f32 %v367, %v1597
        %v1604 = vmul.f32 %v368, %v1597
        %v1605 = vadd.f32 %v1581, %v1599
        %v1606 = vadd.f32 %v1582, %v1600
        %v1607 = vadd.f32 %v1583, %v1601
        %v1608 = vadd.f32 %v1584, %v1602
        %v1609 = vadd.f32 %v1585, %v1603
        %v1610 = vadd.f32 %v1586, %v1604
        %v1611 = vadd.f32 %v1605, %v381
        %v1612 = vadd.f32 %v1606, %v382
        %v1613 = vadd.f32 %v1607, %v383
        %v1614 = vadd.f32 %v1608, %v384
        %v1615 = vadd.f32 %v1609, %v385
        %v1616 = vadd.f32 %v1610, %v386
        %v1617 = vmax.f32 %v1611, 0.0
        %v1618 = vmax.f32 %v1612, 0.0
        %v1619 = vmax.f32 %v1613, 0.0
        %v1620 = vmax.f32 %v1614, 0.0
        %v1621 = vmax.f32 %v1615, 0.0
        %v1622 = vmax.f32 %v1616, 0.0
        %1623 = vst [vmem:[%s205] sm:$0xff] %v1617
        %1624 = vst [vmem:[%s205 + $0x8] sm:$0xff] %v1618
        %1625 = vst [vmem:[%s205 + $0x10] sm:$0xff] %v1619
        %1626 = vst [vmem:[%s205 + $0x18] sm:$0xff] %v1620
        %1627 = vst [vmem:[%s205 + $0x20] sm:$0xff] %v1621
        %1628 = vst [vmem:[%s205 + $0x28] sm:$0xff] %v1622
        %s1629 = sand.u32 %s116, 1
        %s1630 = scalar_lea.sflag [#allocation4], %s1629
        %s1631 = sand.u32 %s116, 1
        %s1632 = smul.addr %s1631, 48
        %s1633 = scalar_lea.vmem [#allocation5], %s1632
        // Predicated region
        $region41: #{tpu_custom_call.1} parent=35 // pred_check
          %p1634 = pneg %p126
        $region42: #{tpu_custom_call.1} parent=35 // pred_check_branch
          %1636 = sbr.rel (%p1634) target = $region44
        $region43: #{tpu_custom_call.1} parent=35 // pred_region
          %s1638 = ssub.s32 768, 768
          %1639 = vsyncadd %s1630, %s1638
          %s1640 = smul.addr %s19, 6
          %s1641 = smul.addr %s1640, 128
          %s1642 = scalar_lea.hbm %s4, %s1641
          %s1643 = sshll.u32 %s1633, 4
          %s1644 = int_to_ptr.vmem [resolvable:$true] %s1643
          %1649 = dma.vmem_to_hbm [thread:$0]  %s1644, 768, %s1642, %s1630, 256, 256, 16
        $region44: #{tpu_custom_call.1} parent=35 // pred_fallthru
          _
      $region36: #{tpu_custom_call.1} parent=5 // pred_fallthru
        _
      %p1650 = scmp.le.s32.totalorder 2, %s14
      // Predicated region
      $region45: #{tpu_custom_call.1} parent=5 // pred_check
        %p1651 = pneg %p1650
      $region46: #{tpu_custom_call.1} parent=5 // pred_check_branch
        %1653 = sbr.rel (%p1651) target = $region48
      $region47: #{tpu_custom_call.1} parent=5 // pred_region
        %s1654 = ssub.s32 %s14, 2
        // Predicated region
        $region49: #{tpu_custom_call.1} parent=47 // pred_check
          %p1655 = pneg %p132
        $region50: #{tpu_custom_call.1} parent=47 // pred_check_branch
          %1657 = sbr.rel (%p1655) target = $region52
        $region51: #{tpu_custom_call.1} parent=47 // pred_region
          %s1658 = sand.u32 %s117, 1
          %s1659 = scalar_lea.sflag [#allocation4], %s1658
          %s1660 = sand.u32 %s117, 1
          %s1661 = smul.addr %s1660, 48
          %s1662 = scalar_lea.vmem [#allocation5], %s1661
          %1663 = dma.done %s1659, 768
        $region52: #{tpu_custom_call.1} parent=47 // pred_fallthru
          _
      $region48: #{tpu_custom_call.1} parent=5 // pred_fallthru
        _
    $region6: #{tpu_custom_call.1} parent=1 // loop_footer
      %s18 = sadd.s32 1, %s14
    $region7: #{tpu_custom_call.1} parent=1 // loop_footer_branch
      %13 = sbr.rel target = $region3
    $region8: #{tpu_custom_call.1} parent=1 // loop_exit
      _
    %1664 = vsyncpa [#allocation3], 1
    %s1665 = scalar_lea.sflag [#allocation3], 1
    %1666 = vsyncpa %s1665, 1
    %1667 = vsyncpa [#allocation4], 1
    %s1668 = scalar_lea.sflag [#allocation4], 1
    %1669 = vsyncpa %s1668, 1

</llo_original>
